<compile_context>
chip_gen: v5e
topology: v5e:2x2
jax: 0.10.0
libtpu: 0.0.40
codegen_flags: <defaults>
</compile_context>

<pallas_src>
import jax
import jax.numpy as jnp
import numpy as np
from jax import lax
from jax.experimental import pallas as pl
from jax.experimental.pallas import tpu as pltpu

HIDDEN = 64
C1 = 16
C2 = 32
KSIZE = 3
NUM_CLASSES = 2

# Sequences (post-conv length) at or below this fully unroll the LSTM recurrence;
# longer ones use lax.fori_loop to bound compile time and vreg live ranges.
_UNROLL_SEQ = 32


def _round_up(x, m):
    return ((x + m - 1) // m) * m


def _model_kernel(x_ref, w1_ref, b1_ref, w2_ref, b2_ref,
                  wih_ref, whh_ref, blstm_ref, wfc_ref, bfc_ref,
                  out_ref, gx_ref):
    # x_ref: (L, TB, Cin) -- time-major; one batch block per grid step.
    L, TB, Cin = x_ref.shape
    L1 = L - (KSIZE - 1)          # after conv1 (valid)
    L2 = L1 - (KSIZE - 1)         # after conv2 (valid)

    x = x_ref[...].astype(jnp.float32)                       # (L, TB, Cin)

    # ---- conv1 (k=3, valid) + ReLU: time & batch folded into matmul M -------
    h1 = jnp.broadcast_to(b1_ref[...], (L1 * TB, C1)).astype(jnp.float32)
    for k in range(KSIZE):
        xk = x[k:k + L1].reshape(L1 * TB, Cin)
        h1 = h1 + jnp.dot(xk, w1_ref[k], preferred_element_type=jnp.float32)
    h1 = jnp.maximum(h1, 0.0).reshape(L1, TB, C1)

    # ---- conv2 (k=3, valid) + ReLU -------------------------------------------
    h2 = jnp.broadcast_to(b2_ref[...], (L2 * TB, C2)).astype(jnp.float32)
    for k in range(KSIZE):
        hk = h1[k:k + L2].reshape(L2 * TB, C1)
        h2 = h2 + jnp.dot(hk, w2_ref[k], preferred_element_type=jnp.float32)
    h2 = jnp.maximum(h2, 0.0)                                 # (L2*TB, 32)

    # ---- LSTM input projection hoisted out of the recurrence ----------------
    # (L2*TB, 32) @ (32, 256) + bias, chunked over time so the live 256-lane
    # value stays small; results staged time-major in VMEM scratch gx_ref.
    wih = wih_ref[...]
    blstm = blstm_ref[...]
    tc = max(1, min(L2, 256 // TB))                           # ~256 rows per chunk
    for t0 in range(0, L2, tc):
        ts = min(tc, L2 - t0)
        gx = jnp.dot(h2[t0 * TB:(t0 + ts) * TB], wih,
                     preferred_element_type=jnp.float32) + blstm
        gx_ref[t0:t0 + ts] = gx.reshape(ts, TB, 4 * HIDDEN)

    # ---- recurrence: only (TB, 64) @ (64, 256) stays on the serial path -----
    whh = whh_ref[...]                                        # loaded once; in vregs

    def step(t, h, c):
        g = gx_ref[t] + jnp.dot(h, whh, preferred_element_type=jnp.float32)
        i_g = jax.nn.sigmoid(g[:, 0 * HIDDEN:1 * HIDDEN])
        f_g = jax.nn.sigmoid(g[:, 1 * HIDDEN:2 * HIDDEN])
        g_g = jnp.tanh(g[:, 2 * HIDDEN:3 * HIDDEN])
        o_g = jax.nn.sigmoid(g[:, 3 * HIDDEN:4 * HIDDEN])
        c = f_g * c + i_g * g_g
        h = o_g * jnp.tanh(c)
        return h, c

    h = jnp.zeros((TB, HIDDEN), jnp.float32)
    c = jnp.zeros((TB, HIDDEN), jnp.float32)
    if L2 <= _UNROLL_SEQ:
        for t in range(L2):                                   # static unroll
            h, c = step(t, h, c)
    else:
        h, c = lax.fori_loop(0, L2, lambda t, hc: step(t, *hc), (h, c))

    # ---- fc1 on the last timestep's hidden state -----------------------------
    out = jnp.dot(h, wfc_ref[...], preferred_element_type=jnp.float32) + bfc_ref[...]
    out_ref[...] = out.astype(out_ref.dtype)                  # (TB, 2)


def stock_cnn_lstm_forward(x, params, *, tb=None):
    """x: (B, seq_len, input_channels) float32 -> (B, 2) float32."""
    B, L, Cin = x.shape
    w1, b1, w2, b2, wih, whh, blstm, wfc, bfc = params

    # Sublane-dense batch block (multiple of 8); pad batch up to it.
    if tb is None:
        tb = min(_round_up(B, 8), 128)
    tb = _round_up(tb, 8)
    Bp = _round_up(B, tb)
    if Bp != B:
        x = jnp.pad(x, ((0, Bp - B), (0, 0), (0, 0)))

    # Time-major layout plumbing (cheap XLA op on the small input): makes every
    # in-kernel reshape a leading-dim merge and per-step gate reads contiguous.
    xt = jnp.transpose(x, (1, 0, 2))                          # (L, Bp, Cin)

    L2 = L - 2 * (KSIZE - 1)
    grid = (Bp // tb,)
    full = lambda shape: pl.BlockSpec(shape, lambda b: tuple(0 for _ in shape))

    out = pl.pallas_call(
        _model_kernel,
        out_shape=jax.ShapeDtypeStruct((Bp, NUM_CLASSES), jnp.float32),
        grid=grid,
        in_specs=[
            pl.BlockSpec((L, tb, Cin), lambda b: (0, b, 0)),   # x: one batch block
            full((KSIZE, Cin, C1)),                            # conv1 weight (k, in, out)
            full((1, C1)),                                     # conv1 bias
            full((KSIZE, C1, C2)),                             # conv2 weight
            full((1, C2)),                                     # conv2 bias
            full((C2, 4 * HIDDEN)),                            # W_ih^T
            full((HIDDEN, 4 * HIDDEN)),                        # W_hh^T
            full((1, 4 * HIDDEN)),                             # b_ih + b_hh
            full((HIDDEN, NUM_CLASSES)),                       # fc1 weight^T
            full((1, NUM_CLASSES)),                            # fc1 bias
        ],
        out_specs=pl.BlockSpec((tb, NUM_CLASSES), lambda b: (b, 0)),
        scratch_shapes=[pltpu.VMEM((L2, tb, 4 * HIDDEN), jnp.float32)],
        compiler_params=pltpu.CompilerParams(
            dimension_semantics=("parallel",)),                # megacore sharding on v7x
    )(xt, w1, b1, w2, b2, wih, whh, blstm, wfc, bfc)

    return out[:B]


def init_params(key, input_channels):
    """Deterministic PyTorch-style uniform init; shapes follow StockCNN_LSTM.__init__."""
    ks = jax.random.split(key, 10)

    def unif(k, shape, fan_in):
        bound = 1.0 / np.sqrt(fan_in)
        return jax.random.uniform(k, shape, jnp.float32, -bound, bound)

    # Conv1d(Cin, 16, 3): torch weight (16, Cin, 3) -> kernel layout (3, Cin, 16)
    w1 = unif(ks[0], (KSIZE, input_channels, C1), input_channels * KSIZE)
    b1 = unif(ks[1], (1, C1), input_channels * KSIZE)
    # Conv1d(16, 32, 3)
    w2 = unif(ks[2], (KSIZE, C1, C2), C1 * KSIZE)
    b2 = unif(ks[3], (1, C2), C1 * KSIZE)
    # LSTM(32, 64): torch W_ih (256, 32), W_hh (256, 64) -> pass transposed
    wih = unif(ks[4], (C2, 4 * HIDDEN), HIDDEN)
    whh = unif(ks[5], (HIDDEN, 4 * HIDDEN), HIDDEN)
    b_ih = unif(ks[6], (1, 4 * HIDDEN), HIDDEN)
    b_hh = unif(ks[7], (1, 4 * HIDDEN), HIDDEN)
    blstm = b_ih + b_hh
    # Linear(64, 2): torch weight (2, 64) -> pass transposed
    wfc = unif(ks[8], (HIDDEN, NUM_CLASSES), HIDDEN)
    bfc = unif(ks[9], (1, NUM_CLASSES), HIDDEN)
    return (w1, b1, w2, b2, wih, whh, blstm, wfc, bfc)


def reference_forward(x, params):
    """Plain-JAX reference matching PyTorch semantics (for correctness check)."""
    w1, b1, w2, b2, wih, whh, blstm, wfc, bfc = params
    B, L, Cin = x.shape
    L1, L2 = L - 2, L - 4
    outs = []
    for b in range(B):
        xb = x[b]
        h1 = jnp.broadcast_to(b1, (L1, C1))
        for k in range(KSIZE):
            h1 = h1 + xb[k:k + L1] @ w1[k]
        h1 = jnp.maximum(h1, 0.0)
        h2 = jnp.broadcast_to(b2, (L2, C2))
        for k in range(KSIZE):
            h2 = h2 + h1[k:k + L2] @ w2[k]
        h2 = jnp.maximum(h2, 0.0)
        h = jnp.zeros((1, HIDDEN)); c = jnp.zeros((1, HIDDEN))
        for t in range(L2):
            g = h2[t:t + 1] @ wih + h @ whh + blstm
            i_g = jax.nn.sigmoid(g[:, :HIDDEN])
            f_g = jax.nn.sigmoid(g[:, HIDDEN:2 * HIDDEN])
            g_g = jnp.tanh(g[:, 2 * HIDDEN:3 * HIDDEN])
            o_g = jax.nn.sigmoid(g[:, 3 * HIDDEN:])
            c = f_g * c + i_g * g_g
            h = o_g * jnp.tanh(c)
        outs.append(h @ wfc + bfc)
    return jnp.concatenate(outs, axis=0)


if __name__ == "__main__":
    key = jax.random.PRNGKey(0)
    k_x, k_p, k_x2 = jax.random.split(key, 3)

    batch, seq_len, input_channels = 2, 16, 4
    params = init_params(k_p, input_channels)

    # Short sequence: static-unroll recurrence path.
    x = jax.random.normal(k_x, (batch, seq_len, input_channels), jnp.float32)
    out = jax.block_until_ready(stock_cnn_lstm_forward(x, params))
    ref = reference_forward(x, params)
    np.testing.assert_allclose(np.asarray(out), np.asarray(ref), rtol=1e-2, atol=1e-2)
    assert out.shape == (batch, NUM_CLASSES)

    # Longer sequence: exercises the lax.fori_loop recurrence path.
    seq_len_long = 40
    x2 = jax.random.normal(k_x2, (batch, seq_len_long, input_channels), jnp.float32)
    out2 = jax.block_until_ready(stock_cnn_lstm_forward(x2, params))
    ref2 = reference_forward(x2, params)
    np.testing.assert_allclose(np.asarray(out2), np.asarray(ref2), rtol=1e-2, atol=1e-2)

    print("KERNEL_OK")
</pallas_src>

<mosaic_0001>
module attributes {stable_mosaic.version = 11 : i64} {
  func.func @_model_kernel(%arg0: i32, %arg1: memref<16x8x4xf32, #tpu.memory_space<vmem>>, %arg2: memref<3x4x16xf32, #tpu.memory_space<vmem>>, %arg3: memref<1x16xf32, #tpu.memory_space<vmem>>, %arg4: memref<3x16x32xf32, #tpu.memory_space<vmem>>, %arg5: memref<1x32xf32, #tpu.memory_space<vmem>>, %arg6: memref<32x256xf32, #tpu.memory_space<vmem>>, %arg7: memref<64x256xf32, #tpu.memory_space<vmem>>, %arg8: memref<1x256xf32, #tpu.memory_space<vmem>>, %arg9: memref<64x2xf32, #tpu.memory_space<vmem>>, %arg10: memref<1x2xf32, #tpu.memory_space<vmem>>, %arg11: memref<8x2xf32, #tpu.memory_space<vmem>>, %arg12: memref<12x8x256xf32, #tpu.memory_space<vmem>>) attributes {dimension_semantics = [#tpu.dimension_semantics<parallel>], iteration_bounds = array<i64: 1>, scalar_prefetch = 0 : i64, scratch_operands = 1 : i64, tpu.core_type = #tpu.core_type<tc>, window_params = [{transform_indices = @transform_0, window_bounds = array<i64: 16, 8, 4>}, {pipeline_mode = #tpu.pipeline_mode<synchronous>, transform_indices = @transform_1, window_bounds = array<i64: 3, 4, 16>}, {pipeline_mode = #tpu.pipeline_mode<synchronous>, transform_indices = @transform_2, window_bounds = array<i64: 1, 16>}, {pipeline_mode = #tpu.pipeline_mode<synchronous>, transform_indices = @transform_3, window_bounds = array<i64: 3, 16, 32>}, {pipeline_mode = #tpu.pipeline_mode<synchronous>, transform_indices = @transform_4, window_bounds = array<i64: 1, 32>}, {pipeline_mode = #tpu.pipeline_mode<synchronous>, transform_indices = @transform_5, window_bounds = array<i64: 32, 256>}, {pipeline_mode = #tpu.pipeline_mode<synchronous>, transform_indices = @transform_6, window_bounds = array<i64: 64, 256>}, {pipeline_mode = #tpu.pipeline_mode<synchronous>, transform_indices = @transform_7, window_bounds = array<i64: 1, 256>}, {pipeline_mode = #tpu.pipeline_mode<synchronous>, transform_indices = @transform_8, window_bounds = array<i64: 64, 2>}, {pipeline_mode = #tpu.pipeline_mode<synchronous>, transform_indices = @transform_9, window_bounds = array<i64: 1, 2>}, {transform_indices = @transform_10, window_bounds = array<i64: 8, 2>}]} {
    %c0 = arith.constant 0 : index
    %c0_0 = arith.constant 0 : index
    %c0_1 = arith.constant 0 : index
    %0 = vector.load %arg1[%c0, %c0_0, %c0_1] : memref<16x8x4xf32, #tpu.memory_space<vmem>>, vector<16x8x4xf32>
    %c0_2 = arith.constant 0 : index
    %c0_3 = arith.constant 0 : index
    %1 = vector.load %arg3[%c0_2, %c0_3] : memref<1x16xf32, #tpu.memory_space<vmem>>, vector<1x16xf32>
    %2 = vector.shape_cast %1 : vector<1x16xf32> to vector<1x16xf32>
    %3 = vector.broadcast %2 : vector<1x16xf32> to vector<112x16xf32>
    %4 = vector.extract_strided_slice %0 {offsets = [0, 0, 0], sizes = [14, 8, 4], strides = [1, 1, 1]} : vector<16x8x4xf32> to vector<14x8x4xf32>
    %5 = vector.shape_cast %4 : vector<14x8x4xf32> to vector<112x4xf32>
    %c0_4 = arith.constant 0 : index
    %c0_5 = arith.constant 0 : index
    %c0_6 = arith.constant 0 : index
    %6 = vector.load %arg2[%c0_4, %c0_5, %c0_6] : memref<3x4x16xf32, #tpu.memory_space<vmem>>, vector<1x4x16xf32>
    %7 = vector.shape_cast %6 : vector<1x4x16xf32> to vector<4x16xf32>
    %cst = arith.constant dense<0.000000e+00> : vector<112x16xf32>
    %8 = tpu.matmul %5, %7, %cst {dimension_numbers = #tpu.dot_dimension_numbers<[1], [0], [0], [1], [0, 0, 1, 1], [], []>} : vector<112x4xf32>, vector<4x16xf32>, vector<112x16xf32> -> vector<112x16xf32>
    %9 = arith.addf %3, %8 : vector<112x16xf32>
    %10 = vector.extract_strided_slice %0 {offsets = [1, 0, 0], sizes = [14, 8, 4], strides = [1, 1, 1]} : vector<16x8x4xf32> to vector<14x8x4xf32>
    %11 = vector.shape_cast %10 : vector<14x8x4xf32> to vector<112x4xf32>
    %c1 = arith.constant 1 : index
    %c0_7 = arith.constant 0 : index
    %c0_8 = arith.constant 0 : index
    %12 = vector.load %arg2[%c1, %c0_7, %c0_8] : memref<3x4x16xf32, #tpu.memory_space<vmem>>, vector<1x4x16xf32>
    %13 = vector.shape_cast %12 : vector<1x4x16xf32> to vector<4x16xf32>
    %cst_9 = arith.constant dense<0.000000e+00> : vector<112x16xf32>
    %14 = tpu.matmul %11, %13, %cst_9 {dimension_numbers = #tpu.dot_dimension_numbers<[1], [0], [0], [1], [0, 0, 1, 1], [], []>} : vector<112x4xf32>, vector<4x16xf32>, vector<112x16xf32> -> vector<112x16xf32>
    %15 = arith.addf %9, %14 : vector<112x16xf32>
    %16 = vector.extract_strided_slice %0 {offsets = [2, 0, 0], sizes = [14, 8, 4], strides = [1, 1, 1]} : vector<16x8x4xf32> to vector<14x8x4xf32>
    %17 = vector.shape_cast %16 : vector<14x8x4xf32> to vector<112x4xf32>
    %c2 = arith.constant 2 : index
    %c0_10 = arith.constant 0 : index
    %c0_11 = arith.constant 0 : index
    %18 = vector.load %arg2[%c2, %c0_10, %c0_11] : memref<3x4x16xf32, #tpu.memory_space<vmem>>, vector<1x4x16xf32>
    %19 = vector.shape_cast %18 : vector<1x4x16xf32> to vector<4x16xf32>
    %cst_12 = arith.constant dense<0.000000e+00> : vector<112x16xf32>
    %20 = tpu.matmul %17, %19, %cst_12 {dimension_numbers = #tpu.dot_dimension_numbers<[1], [0], [0], [1], [0, 0, 1, 1], [], []>} : vector<112x4xf32>, vector<4x16xf32>, vector<112x16xf32> -> vector<112x16xf32>
    %21 = arith.addf %15, %20 : vector<112x16xf32>
    %cst_13 = arith.constant 0.000000e+00 : f32
    %22 = vector.broadcast %cst_13 : f32 to vector<112x16xf32>
    %23 = arith.maximumf %21, %22 : vector<112x16xf32>
    %24 = vector.shape_cast %23 : vector<112x16xf32> to vector<14x8x16xf32>
    %c0_14 = arith.constant 0 : index
    %c0_15 = arith.constant 0 : index
    %25 = vector.load %arg5[%c0_14, %c0_15] : memref<1x32xf32, #tpu.memory_space<vmem>>, vector<1x32xf32>
    %26 = vector.shape_cast %25 : vector<1x32xf32> to vector<1x32xf32>
    %27 = vector.broadcast %26 : vector<1x32xf32> to vector<96x32xf32>
    %28 = vector.extract_strided_slice %24 {offsets = [0, 0, 0], sizes = [12, 8, 16], strides = [1, 1, 1]} : vector<14x8x16xf32> to vector<12x8x16xf32>
    %29 = vector.shape_cast %28 : vector<12x8x16xf32> to vector<96x16xf32>
    %c0_16 = arith.constant 0 : index
    %c0_17 = arith.constant 0 : index
    %c0_18 = arith.constant 0 : index
    %30 = vector.load %arg4[%c0_16, %c0_17, %c0_18] : memref<3x16x32xf32, #tpu.memory_space<vmem>>, vector<1x16x32xf32>
    %31 = vector.shape_cast %30 : vector<1x16x32xf32> to vector<16x32xf32>
    %cst_19 = arith.constant dense<0.000000e+00> : vector<96x32xf32>
    %32 = tpu.matmul %29, %31, %cst_19 {dimension_numbers = #tpu.dot_dimension_numbers<[1], [0], [0], [1], [0, 0, 1, 1], [], []>} : vector<96x16xf32>, vector<16x32xf32>, vector<96x32xf32> -> vector<96x32xf32>
    %33 = arith.addf %27, %32 : vector<96x32xf32>
    %34 = vector.extract_strided_slice %24 {offsets = [1, 0, 0], sizes = [12, 8, 16], strides = [1, 1, 1]} : vector<14x8x16xf32> to vector<12x8x16xf32>
    %35 = vector.shape_cast %34 : vector<12x8x16xf32> to vector<96x16xf32>
    %c1_20 = arith.constant 1 : index
    %c0_21 = arith.constant 0 : index
    %c0_22 = arith.constant 0 : index
    %36 = vector.load %arg4[%c1_20, %c0_21, %c0_22] : memref<3x16x32xf32, #tpu.memory_space<vmem>>, vector<1x16x32xf32>
    %37 = vector.shape_cast %36 : vector<1x16x32xf32> to vector<16x32xf32>
    %cst_23 = arith.constant dense<0.000000e+00> : vector<96x32xf32>
    %38 = tpu.matmul %35, %37, %cst_23 {dimension_numbers = #tpu.dot_dimension_numbers<[1], [0], [0], [1], [0, 0, 1, 1], [], []>} : vector<96x16xf32>, vector<16x32xf32>, vector<96x32xf32> -> vector<96x32xf32>
    %39 = arith.addf %33, %38 : vector<96x32xf32>
    %40 = vector.extract_strided_slice %24 {offsets = [2, 0, 0], sizes = [12, 8, 16], strides = [1, 1, 1]} : vector<14x8x16xf32> to vector<12x8x16xf32>
    %41 = vector.shape_cast %40 : vector<12x8x16xf32> to vector<96x16xf32>
    %c2_24 = arith.constant 2 : index
    %c0_25 = arith.constant 0 : index
    %c0_26 = arith.constant 0 : index
    %42 = vector.load %arg4[%c2_24, %c0_25, %c0_26] : memref<3x16x32xf32, #tpu.memory_space<vmem>>, vector<1x16x32xf32>
    %43 = vector.shape_cast %42 : vector<1x16x32xf32> to vector<16x32xf32>
    %cst_27 = arith.constant dense<0.000000e+00> : vector<96x32xf32>
    %44 = tpu.matmul %41, %43, %cst_27 {dimension_numbers = #tpu.dot_dimension_numbers<[1], [0], [0], [1], [0, 0, 1, 1], [], []>} : vector<96x16xf32>, vector<16x32xf32>, vector<96x32xf32> -> vector<96x32xf32>
    %45 = arith.addf %39, %44 : vector<96x32xf32>
    %cst_28 = arith.constant 0.000000e+00 : f32
    %46 = vector.broadcast %cst_28 : f32 to vector<96x32xf32>
    %47 = arith.maximumf %45, %46 : vector<96x32xf32>
    %c0_29 = arith.constant 0 : index
    %c0_30 = arith.constant 0 : index
    %48 = vector.load %arg6[%c0_29, %c0_30] : memref<32x256xf32, #tpu.memory_space<vmem>>, vector<32x256xf32>
    %c0_31 = arith.constant 0 : index
    %c0_32 = arith.constant 0 : index
    %49 = vector.load %arg8[%c0_31, %c0_32] : memref<1x256xf32, #tpu.memory_space<vmem>>, vector<1x256xf32>
    %cst_33 = arith.constant dense<0.000000e+00> : vector<96x256xf32>
    %50 = tpu.matmul %47, %48, %cst_33 {dimension_numbers = #tpu.dot_dimension_numbers<[1], [0], [0], [1], [0, 0, 1, 1], [], []>} : vector<96x32xf32>, vector<32x256xf32>, vector<96x256xf32> -> vector<96x256xf32>
    %51 = vector.broadcast %49 : vector<1x256xf32> to vector<96x256xf32>
    %52 = arith.addf %50, %51 : vector<96x256xf32>
    %53 = vector.shape_cast %52 : vector<96x256xf32> to vector<12x8x256xf32>
    %c0_34 = arith.constant 0 : index
    %c0_35 = arith.constant 0 : index
    %c0_36 = arith.constant 0 : index
    %54 = vector.load %arg12[%c0_34, %c0_35, %c0_36] : memref<12x8x256xf32, #tpu.memory_space<vmem>>, vector<12x8x256xf32>
    tpu.vector_store %arg12[%c0_34, %c0_35, %c0_36], %53 {strides = array<i32>} : memref<12x8x256xf32, #tpu.memory_space<vmem>>, vector<12x8x256xf32>,
    %c0_37 = arith.constant 0 : index
    %c0_38 = arith.constant 0 : index
    %55 = vector.load %arg7[%c0_37, %c0_38] : memref<64x256xf32, #tpu.memory_space<vmem>>, vector<64x256xf32>
    %cst_39 = arith.constant 0.000000e+00 : f32
    %56 = vector.broadcast %cst_39 : f32 to vector<8x64xf32>
    %cst_40 = arith.constant 0.000000e+00 : f32
    %57 = vector.broadcast %cst_40 : f32 to vector<8x64xf32>
    %c0_41 = arith.constant 0 : index
    %c0_42 = arith.constant 0 : index
    %c0_43 = arith.constant 0 : index
    %58 = vector.load %arg12[%c0_41, %c0_42, %c0_43] : memref<12x8x256xf32, #tpu.memory_space<vmem>>, vector<1x8x256xf32>
    %59 = vector.shape_cast %58 : vector<1x8x256xf32> to vector<8x256xf32>
    %cst_44 = arith.constant dense<0.000000e+00> : vector<8x256xf32>
    %60 = tpu.matmul %56, %55, %cst_44 {dimension_numbers = #tpu.dot_dimension_numbers<[1], [0], [0], [1], [0, 0, 1, 1], [], []>} : vector<8x64xf32>, vector<64x256xf32>, vector<8x256xf32> -> vector<8x256xf32>
    %61 = arith.addf %59, %60 : vector<8x256xf32>
    %62 = vector.extract_strided_slice %61 {offsets = [0, 0], sizes = [8, 64], strides = [1, 1]} : vector<8x256xf32> to vector<8x64xf32>
    %63 = arith.negf %62 : vector<8x64xf32>
    %64 = math.exp %63 : vector<8x64xf32>
    %cst_45 = arith.constant 1.000000e+00 : f32
    %65 = vector.broadcast %cst_45 : f32 to vector<8x64xf32>
    %66 = arith.addf %65, %64 : vector<8x64xf32>
    %67 = arith.divf %65, %66 : vector<8x64xf32>
    %68 = vector.extract_strided_slice %61 {offsets = [0, 64], sizes = [8, 64], strides = [1, 1]} : vector<8x256xf32> to vector<8x64xf32>
    %69 = arith.negf %68 : vector<8x64xf32>
    %70 = math.exp %69 : vector<8x64xf32>
    %cst_46 = arith.constant 1.000000e+00 : f32
    %71 = vector.broadcast %cst_46 : f32 to vector<8x64xf32>
    %72 = arith.addf %71, %70 : vector<8x64xf32>
    %73 = arith.divf %71, %72 : vector<8x64xf32>
    %74 = vector.extract_strided_slice %61 {offsets = [0, 128], sizes = [8, 64], strides = [1, 1]} : vector<8x256xf32> to vector<8x64xf32>
    %75 = math.tanh %74 : vector<8x64xf32>
    %76 = vector.extract_strided_slice %61 {offsets = [0, 192], sizes = [8, 64], strides = [1, 1]} : vector<8x256xf32> to vector<8x64xf32>
    %77 = arith.negf %76 : vector<8x64xf32>
    %78 = math.exp %77 : vector<8x64xf32>
    %cst_47 = arith.constant 1.000000e+00 : f32
    %79 = vector.broadcast %cst_47 : f32 to vector<8x64xf32>
    %80 = arith.addf %79, %78 : vector<8x64xf32>
    %81 = arith.divf %79, %80 : vector<8x64xf32>
    %82 = arith.mulf %73, %57 : vector<8x64xf32>
    %83 = arith.mulf %67, %75 : vector<8x64xf32>
    %84 = arith.addf %82, %83 : vector<8x64xf32>
    %85 = math.tanh %84 : vector<8x64xf32>
    %86 = arith.mulf %81, %85 : vector<8x64xf32>
    %c1_48 = arith.constant 1 : index
    %c0_49 = arith.constant 0 : index
    %c0_50 = arith.constant 0 : index
    %87 = vector.load %arg12[%c1_48, %c0_49, %c0_50] : memref<12x8x256xf32, #tpu.memory_space<vmem>>, vector<1x8x256xf32>
    %88 = vector.shape_cast %87 : vector<1x8x256xf32> to vector<8x256xf32>
    %cst_51 = arith.constant dense<0.000000e+00> : vector<8x256xf32>
    %89 = tpu.matmul %86, %55, %cst_51 {dimension_numbers = #tpu.dot_dimension_numbers<[1], [0], [0], [1], [0, 0, 1, 1], [], []>} : vector<8x64xf32>, vector<64x256xf32>, vector<8x256xf32> -> vector<8x256xf32>
    %90 = arith.addf %88, %89 : vector<8x256xf32>
    %91 = vector.extract_strided_slice %90 {offsets = [0, 0], sizes = [8, 64], strides = [1, 1]} : vector<8x256xf32> to vector<8x64xf32>
    %92 = arith.negf %91 : vector<8x64xf32>
    %93 = math.exp %92 : vector<8x64xf32>
    %cst_52 = arith.constant 1.000000e+00 : f32
    %94 = vector.broadcast %cst_52 : f32 to vector<8x64xf32>
    %95 = arith.addf %94, %93 : vector<8x64xf32>
    %96 = arith.divf %94, %95 : vector<8x64xf32>
    %97 = vector.extract_strided_slice %90 {offsets = [0, 64], sizes = [8, 64], strides = [1, 1]} : vector<8x256xf32> to vector<8x64xf32>
    %98 = arith.negf %97 : vector<8x64xf32>
    %99 = math.exp %98 : vector<8x64xf32>
    %cst_53 = arith.constant 1.000000e+00 : f32
    %100 = vector.broadcast %cst_53 : f32 to vector<8x64xf32>
    %101 = arith.addf %100, %99 : vector<8x64xf32>
    %102 = arith.divf %100, %101 : vector<8x64xf32>
    %103 = vector.extract_strided_slice %90 {offsets = [0, 128], sizes = [8, 64], strides = [1, 1]} : vector<8x256xf32> to vector<8x64xf32>
    %104 = math.tanh %103 : vector<8x64xf32>
    %105 = vector.extract_strided_slice %90 {offsets = [0, 192], sizes = [8, 64], strides = [1, 1]} : vector<8x256xf32> to vector<8x64xf32>
    %106 = arith.negf %105 : vector<8x64xf32>
    %107 = math.exp %106 : vector<8x64xf32>
    %cst_54 = arith.constant 1.000000e+00 : f32
    %108 = vector.broadcast %cst_54 : f32 to vector<8x64xf32>
    %109 = arith.addf %108, %107 : vector<8x64xf32>
    %110 = arith.divf %108, %109 : vector<8x64xf32>
    %111 = arith.mulf %102, %84 : vector<8x64xf32>
    %112 = arith.mulf %96, %104 : vector<8x64xf32>
    %113 = arith.addf %111, %112 : vector<8x64xf32>
    %114 = math.tanh %113 : vector<8x64xf32>
    %115 = arith.mulf %110, %114 : vector<8x64xf32>
    %c2_55 = arith.constant 2 : index
    %c0_56 = arith.constant 0 : index
    %c0_57 = arith.constant 0 : index
    %116 = vector.load %arg12[%c2_55, %c0_56, %c0_57] : memref<12x8x256xf32, #tpu.memory_space<vmem>>, vector<1x8x256xf32>
    %117 = vector.shape_cast %116 : vector<1x8x256xf32> to vector<8x256xf32>
    %cst_58 = arith.constant dense<0.000000e+00> : vector<8x256xf32>
    %118 = tpu.matmul %115, %55, %cst_58 {dimension_numbers = #tpu.dot_dimension_numbers<[1], [0], [0], [1], [0, 0, 1, 1], [], []>} : vector<8x64xf32>, vector<64x256xf32>, vector<8x256xf32> -> vector<8x256xf32>
    %119 = arith.addf %117, %118 : vector<8x256xf32>
    %120 = vector.extract_strided_slice %119 {offsets = [0, 0], sizes = [8, 64], strides = [1, 1]} : vector<8x256xf32> to vector<8x64xf32>
    %121 = arith.negf %120 : vector<8x64xf32>
    %122 = math.exp %121 : vector<8x64xf32>
    %cst_59 = arith.constant 1.000000e+00 : f32
    %123 = vector.broadcast %cst_59 : f32 to vector<8x64xf32>
    %124 = arith.addf %123, %122 : vector<8x64xf32>
    %125 = arith.divf %123, %124 : vector<8x64xf32>
    %126 = vector.extract_strided_slice %119 {offsets = [0, 64], sizes = [8, 64], strides = [1, 1]} : vector<8x256xf32> to vector<8x64xf32>
    %127 = arith.negf %126 : vector<8x64xf32>
    %128 = math.exp %127 : vector<8x64xf32>
    %cst_60 = arith.constant 1.000000e+00 : f32
    %129 = vector.broadcast %cst_60 : f32 to vector<8x64xf32>
    %130 = arith.addf %129, %128 : vector<8x64xf32>
    %131 = arith.divf %129, %130 : vector<8x64xf32>
    %132 = vector.extract_strided_slice %119 {offsets = [0, 128], sizes = [8, 64], strides = [1, 1]} : vector<8x256xf32> to vector<8x64xf32>
    %133 = math.tanh %132 : vector<8x64xf32>
    %134 = vector.extract_strided_slice %119 {offsets = [0, 192], sizes = [8, 64], strides = [1, 1]} : vector<8x256xf32> to vector<8x64xf32>
    %135 = arith.negf %134 : vector<8x64xf32>
    %136 = math.exp %135 : vector<8x64xf32>
    %cst_61 = arith.constant 1.000000e+00 : f32
    %137 = vector.broadcast %cst_61 : f32 to vector<8x64xf32>
    %138 = arith.addf %137, %136 : vector<8x64xf32>
    %139 = arith.divf %137, %138 : vector<8x64xf32>
    %140 = arith.mulf %131, %113 : vector<8x64xf32>
    %141 = arith.mulf %125, %133 : vector<8x64xf32>
    %142 = arith.addf %140, %141 : vector<8x64xf32>
    %143 = math.tanh %142 : vector<8x64xf32>
    %144 = arith.mulf %139, %143 : vector<8x64xf32>
    %c3 = arith.constant 3 : index
    %c0_62 = arith.constant 0 : index
    %c0_63 = arith.constant 0 : index
    %145 = vector.load %arg12[%c3, %c0_62, %c0_63] : memref<12x8x256xf32, #tpu.memory_space<vmem>>, vector<1x8x256xf32>
    %146 = vector.shape_cast %145 : vector<1x8x256xf32> to vector<8x256xf32>
    %cst_64 = arith.constant dense<0.000000e+00> : vector<8x256xf32>
    %147 = tpu.matmul %144, %55, %cst_64 {dimension_numbers = #tpu.dot_dimension_numbers<[1], [0], [0], [1], [0, 0, 1, 1], [], []>} : vector<8x64xf32>, vector<64x256xf32>, vector<8x256xf32> -> vector<8x256xf32>
    %148 = arith.addf %146, %147 : vector<8x256xf32>
    %149 = vector.extract_strided_slice %148 {offsets = [0, 0], sizes = [8, 64], strides = [1, 1]} : vector<8x256xf32> to vector<8x64xf32>
    %150 = arith.negf %149 : vector<8x64xf32>
    %151 = math.exp %150 : vector<8x64xf32>
    %cst_65 = arith.constant 1.000000e+00 : f32
    %152 = vector.broadcast %cst_65 : f32 to vector<8x64xf32>
    %153 = arith.addf %152, %151 : vector<8x64xf32>
    %154 = arith.divf %152, %153 : vector<8x64xf32>
    %155 = vector.extract_strided_slice %148 {offsets = [0, 64], sizes = [8, 64], strides = [1, 1]} : vector<8x256xf32> to vector<8x64xf32>
    %156 = arith.negf %155 : vector<8x64xf32>
    %157 = math.exp %156 : vector<8x64xf32>
    %cst_66 = arith.constant 1.000000e+00 : f32
    %158 = vector.broadcast %cst_66 : f32 to vector<8x64xf32>
    %159 = arith.addf %158, %157 : vector<8x64xf32>
    %160 = arith.divf %158, %159 : vector<8x64xf32>
    %161 = vector.extract_strided_slice %148 {offsets = [0, 128], sizes = [8, 64], strides = [1, 1]} : vector<8x256xf32> to vector<8x64xf32>
    %162 = math.tanh %161 : vector<8x64xf32>
    %163 = vector.extract_strided_slice %148 {offsets = [0, 192], sizes = [8, 64], strides = [1, 1]} : vector<8x256xf32> to vector<8x64xf32>
    %164 = arith.negf %163 : vector<8x64xf32>
    %165 = math.exp %164 : vector<8x64xf32>
    %cst_67 = arith.constant 1.000000e+00 : f32
    %166 = vector.broadcast %cst_67 : f32 to vector<8x64xf32>
    %167 = arith.addf %166, %165 : vector<8x64xf32>
    %168 = arith.divf %166, %167 : vector<8x64xf32>
    %169 = arith.mulf %160, %142 : vector<8x64xf32>
    %170 = arith.mulf %154, %162 : vector<8x64xf32>
    %171 = arith.addf %169, %170 : vector<8x64xf32>
    %172 = math.tanh %171 : vector<8x64xf32>
    %173 = arith.mulf %168, %172 : vector<8x64xf32>
    %c4 = arith.constant 4 : index
    %c0_68 = arith.constant 0 : index
    %c0_69 = arith.constant 0 : index
    %174 = vector.load %arg12[%c4, %c0_68, %c0_69] : memref<12x8x256xf32, #tpu.memory_space<vmem>>, vector<1x8x256xf32>
    %175 = vector.shape_cast %174 : vector<1x8x256xf32> to vector<8x256xf32>
    %cst_70 = arith.constant dense<0.000000e+00> : vector<8x256xf32>
    %176 = tpu.matmul %173, %55, %cst_70 {dimension_numbers = #tpu.dot_dimension_numbers<[1], [0], [0], [1], [0, 0, 1, 1], [], []>} : vector<8x64xf32>, vector<64x256xf32>, vector<8x256xf32> -> vector<8x256xf32>
    %177 = arith.addf %175, %176 : vector<8x256xf32>
    %178 = vector.extract_strided_slice %177 {offsets = [0, 0], sizes = [8, 64], strides = [1, 1]} : vector<8x256xf32> to vector<8x64xf32>
    %179 = arith.negf %178 : vector<8x64xf32>
    %180 = math.exp %179 : vector<8x64xf32>
    %cst_71 = arith.constant 1.000000e+00 : f32
    %181 = vector.broadcast %cst_71 : f32 to vector<8x64xf32>
    %182 = arith.addf %181, %180 : vector<8x64xf32>
    %183 = arith.divf %181, %182 : vector<8x64xf32>
    %184 = vector.extract_strided_slice %177 {offsets = [0, 64], sizes = [8, 64], strides = [1, 1]} : vector<8x256xf32> to vector<8x64xf32>
    %185 = arith.negf %184 : vector<8x64xf32>
    %186 = math.exp %185 : vector<8x64xf32>
    %cst_72 = arith.constant 1.000000e+00 : f32
    %187 = vector.broadcast %cst_72 : f32 to vector<8x64xf32>
    %188 = arith.addf %187, %186 : vector<8x64xf32>
    %189 = arith.divf %187, %188 : vector<8x64xf32>
    %190 = vector.extract_strided_slice %177 {offsets = [0, 128], sizes = [8, 64], strides = [1, 1]} : vector<8x256xf32> to vector<8x64xf32>
    %191 = math.tanh %190 : vector<8x64xf32>
    %192 = vector.extract_strided_slice %177 {offsets = [0, 192], sizes = [8, 64], strides = [1, 1]} : vector<8x256xf32> to vector<8x64xf32>
    %193 = arith.negf %192 : vector<8x64xf32>
    %194 = math.exp %193 : vector<8x64xf32>
    %cst_73 = arith.constant 1.000000e+00 : f32
    %195 = vector.broadcast %cst_73 : f32 to vector<8x64xf32>
    %196 = arith.addf %195, %194 : vector<8x64xf32>
    %197 = arith.divf %195, %196 : vector<8x64xf32>
    %198 = arith.mulf %189, %171 : vector<8x64xf32>
    %199 = arith.mulf %183, %191 : vector<8x64xf32>
    %200 = arith.addf %198, %199 : vector<8x64xf32>
    %201 = math.tanh %200 : vector<8x64xf32>
    %202 = arith.mulf %197, %201 : vector<8x64xf32>
    %c5 = arith.constant 5 : index
    %c0_74 = arith.constant 0 : index
    %c0_75 = arith.constant 0 : index
    %203 = vector.load %arg12[%c5, %c0_74, %c0_75] : memref<12x8x256xf32, #tpu.memory_space<vmem>>, vector<1x8x256xf32>
    %204 = vector.shape_cast %203 : vector<1x8x256xf32> to vector<8x256xf32>
    %cst_76 = arith.constant dense<0.000000e+00> : vector<8x256xf32>
    %205 = tpu.matmul %202, %55, %cst_76 {dimension_numbers = #tpu.dot_dimension_numbers<[1], [0], [0], [1], [0, 0, 1, 1], [], []>} : vector<8x64xf32>, vector<64x256xf32>, vector<8x256xf32> -> vector<8x256xf32>
    %206 = arith.addf %204, %205 : vector<8x256xf32>
    %207 = vector.extract_strided_slice %206 {offsets = [0, 0], sizes = [8, 64], strides = [1, 1]} : vector<8x256xf32> to vector<8x64xf32>
    %208 = arith.negf %207 : vector<8x64xf32>
    %209 = math.exp %208 : vector<8x64xf32>
    %cst_77 = arith.constant 1.000000e+00 : f32
    %210 = vector.broadcast %cst_77 : f32 to vector<8x64xf32>
    %211 = arith.addf %210, %209 : vector<8x64xf32>
    %212 = arith.divf %210, %211 : vector<8x64xf32>
    %213 = vector.extract_strided_slice %206 {offsets = [0, 64], sizes = [8, 64], strides = [1, 1]} : vector<8x256xf32> to vector<8x64xf32>
    %214 = arith.negf %213 : vector<8x64xf32>
    %215 = math.exp %214 : vector<8x64xf32>
    %cst_78 = arith.constant 1.000000e+00 : f32
    %216 = vector.broadcast %cst_78 : f32 to vector<8x64xf32>
    %217 = arith.addf %216, %215 : vector<8x64xf32>
    %218 = arith.divf %216, %217 : vector<8x64xf32>
    %219 = vector.extract_strided_slice %206 {offsets = [0, 128], sizes = [8, 64], strides = [1, 1]} : vector<8x256xf32> to vector<8x64xf32>
    %220 = math.tanh %219 : vector<8x64xf32>
    %221 = vector.extract_strided_slice %206 {offsets = [0, 192], sizes = [8, 64], strides = [1, 1]} : vector<8x256xf32> to vector<8x64xf32>
    %222 = arith.negf %221 : vector<8x64xf32>
    %223 = math.exp %222 : vector<8x64xf32>
    %cst_79 = arith.constant 1.000000e+00 : f32
    %224 = vector.broadcast %cst_79 : f32 to vector<8x64xf32>
    %225 = arith.addf %224, %223 : vector<8x64xf32>
    %226 = arith.divf %224, %225 : vector<8x64xf32>
    %227 = arith.mulf %218, %200 : vector<8x64xf32>
    %228 = arith.mulf %212, %220 : vector<8x64xf32>
    %229 = arith.addf %227, %228 : vector<8x64xf32>
    %230 = math.tanh %229 : vector<8x64xf32>
    %231 = arith.mulf %226, %230 : vector<8x64xf32>
    %c6 = arith.constant 6 : index
    %c0_80 = arith.constant 0 : index
    %c0_81 = arith.constant 0 : index
    %232 = vector.load %arg12[%c6, %c0_80, %c0_81] : memref<12x8x256xf32, #tpu.memory_space<vmem>>, vector<1x8x256xf32>
    %233 = vector.shape_cast %232 : vector<1x8x256xf32> to vector<8x256xf32>
    %cst_82 = arith.constant dense<0.000000e+00> : vector<8x256xf32>
    %234 = tpu.matmul %231, %55, %cst_82 {dimension_numbers = #tpu.dot_dimension_numbers<[1], [0], [0], [1], [0, 0, 1, 1], [], []>} : vector<8x64xf32>, vector<64x256xf32>, vector<8x256xf32> -> vector<8x256xf32>
    %235 = arith.addf %233, %234 : vector<8x256xf32>
    %236 = vector.extract_strided_slice %235 {offsets = [0, 0], sizes = [8, 64], strides = [1, 1]} : vector<8x256xf32> to vector<8x64xf32>
    %237 = arith.negf %236 : vector<8x64xf32>
    %238 = math.exp %237 : vector<8x64xf32>
    %cst_83 = arith.constant 1.000000e+00 : f32
    %239 = vector.broadcast %cst_83 : f32 to vector<8x64xf32>
    %240 = arith.addf %239, %238 : vector<8x64xf32>
    %241 = arith.divf %239, %240 : vector<8x64xf32>
    %242 = vector.extract_strided_slice %235 {offsets = [0, 64], sizes = [8, 64], strides = [1, 1]} : vector<8x256xf32> to vector<8x64xf32>
    %243 = arith.negf %242 : vector<8x64xf32>
    %244 = math.exp %243 : vector<8x64xf32>
    %cst_84 = arith.constant 1.000000e+00 : f32
    %245 = vector.broadcast %cst_84 : f32 to vector<8x64xf32>
    %246 = arith.addf %245, %244 : vector<8x64xf32>
    %247 = arith.divf %245, %246 : vector<8x64xf32>
    %248 = vector.extract_strided_slice %235 {offsets = [0, 128], sizes = [8, 64], strides = [1, 1]} : vector<8x256xf32> to vector<8x64xf32>
    %249 = math.tanh %248 : vector<8x64xf32>
    %250 = vector.extract_strided_slice %235 {offsets = [0, 192], sizes = [8, 64], strides = [1, 1]} : vector<8x256xf32> to vector<8x64xf32>
    %251 = arith.negf %250 : vector<8x64xf32>
    %252 = math.exp %251 : vector<8x64xf32>
    %cst_85 = arith.constant 1.000000e+00 : f32
    %253 = vector.broadcast %cst_85 : f32 to vector<8x64xf32>
    %254 = arith.addf %253, %252 : vector<8x64xf32>
    %255 = arith.divf %253, %254 : vector<8x64xf32>
    %256 = arith.mulf %247, %229 : vector<8x64xf32>
    %257 = arith.mulf %241, %249 : vector<8x64xf32>
    %258 = arith.addf %256, %257 : vector<8x64xf32>
    %259 = math.tanh %258 : vector<8x64xf32>
    %260 = arith.mulf %255, %259 : vector<8x64xf32>
    %c7 = arith.constant 7 : index
    %c0_86 = arith.constant 0 : index
    %c0_87 = arith.constant 0 : index
    %261 = vector.load %arg12[%c7, %c0_86, %c0_87] : memref<12x8x256xf32, #tpu.memory_space<vmem>>, vector<1x8x256xf32>
    %262 = vector.shape_cast %261 : vector<1x8x256xf32> to vector<8x256xf32>
    %cst_88 = arith.constant dense<0.000000e+00> : vector<8x256xf32>
    %263 = tpu.matmul %260, %55, %cst_88 {dimension_numbers = #tpu.dot_dimension_numbers<[1], [0], [0], [1], [0, 0, 1, 1], [], []>} : vector<8x64xf32>, vector<64x256xf32>, vector<8x256xf32> -> vector<8x256xf32>
    %264 = arith.addf %262, %263 : vector<8x256xf32>
    %265 = vector.extract_strided_slice %264 {offsets = [0, 0], sizes = [8, 64], strides = [1, 1]} : vector<8x256xf32> to vector<8x64xf32>
    %266 = arith.negf %265 : vector<8x64xf32>
    %267 = math.exp %266 : vector<8x64xf32>
    %cst_89 = arith.constant 1.000000e+00 : f32
    %268 = vector.broadcast %cst_89 : f32 to vector<8x64xf32>
    %269 = arith.addf %268, %267 : vector<8x64xf32>
    %270 = arith.divf %268, %269 : vector<8x64xf32>
    %271 = vector.extract_strided_slice %264 {offsets = [0, 64], sizes = [8, 64], strides = [1, 1]} : vector<8x256xf32> to vector<8x64xf32>
    %272 = arith.negf %271 : vector<8x64xf32>
    %273 = math.exp %272 : vector<8x64xf32>
    %cst_90 = arith.constant 1.000000e+00 : f32
    %274 = vector.broadcast %cst_90 : f32 to vector<8x64xf32>
    %275 = arith.addf %274, %273 : vector<8x64xf32>
    %276 = arith.divf %274, %275 : vector<8x64xf32>
    %277 = vector.extract_strided_slice %264 {offsets = [0, 128], sizes = [8, 64], strides = [1, 1]} : vector<8x256xf32> to vector<8x64xf32>
    %278 = math.tanh %277 : vector<8x64xf32>
    %279 = vector.extract_strided_slice %264 {offsets = [0, 192], sizes = [8, 64], strides = [1, 1]} : vector<8x256xf32> to vector<8x64xf32>
    %280 = arith.negf %279 : vector<8x64xf32>
    %281 = math.exp %280 : vector<8x64xf32>
    %cst_91 = arith.constant 1.000000e+00 : f32
    %282 = vector.broadcast %cst_91 : f32 to vector<8x64xf32>
    %283 = arith.addf %282, %281 : vector<8x64xf32>
    %284 = arith.divf %282, %283 : vector<8x64xf32>
    %285 = arith.mulf %276, %258 : vector<8x64xf32>
    %286 = arith.mulf %270, %278 : vector<8x64xf32>
    %287 = arith.addf %285, %286 : vector<8x64xf32>
    %288 = math.tanh %287 : vector<8x64xf32>
    %289 = arith.mulf %284, %288 : vector<8x64xf32>
    %c8 = arith.constant 8 : index
    %c0_92 = arith.constant 0 : index
    %c0_93 = arith.constant 0 : index
    %290 = vector.load %arg12[%c8, %c0_92, %c0_93] : memref<12x8x256xf32, #tpu.memory_space<vmem>>, vector<1x8x256xf32>
    %291 = vector.shape_cast %290 : vector<1x8x256xf32> to vector<8x256xf32>
    %cst_94 = arith.constant dense<0.000000e+00> : vector<8x256xf32>
    %292 = tpu.matmul %289, %55, %cst_94 {dimension_numbers = #tpu.dot_dimension_numbers<[1], [0], [0], [1], [0, 0, 1, 1], [], []>} : vector<8x64xf32>, vector<64x256xf32>, vector<8x256xf32> -> vector<8x256xf32>
    %293 = arith.addf %291, %292 : vector<8x256xf32>
    %294 = vector.extract_strided_slice %293 {offsets = [0, 0], sizes = [8, 64], strides = [1, 1]} : vector<8x256xf32> to vector<8x64xf32>
    %295 = arith.negf %294 : vector<8x64xf32>
    %296 = math.exp %295 : vector<8x64xf32>
    %cst_95 = arith.constant 1.000000e+00 : f32
    %297 = vector.broadcast %cst_95 : f32 to vector<8x64xf32>
    %298 = arith.addf %297, %296 : vector<8x64xf32>
    %299 = arith.divf %297, %298 : vector<8x64xf32>
    %300 = vector.extract_strided_slice %293 {offsets = [0, 64], sizes = [8, 64], strides = [1, 1]} : vector<8x256xf32> to vector<8x64xf32>
    %301 = arith.negf %300 : vector<8x64xf32>
    %302 = math.exp %301 : vector<8x64xf32>
    %cst_96 = arith.constant 1.000000e+00 : f32
    %303 = vector.broadcast %cst_96 : f32 to vector<8x64xf32>
    %304 = arith.addf %303, %302 : vector<8x64xf32>
    %305 = arith.divf %303, %304 : vector<8x64xf32>
    %306 = vector.extract_strided_slice %293 {offsets = [0, 128], sizes = [8, 64], strides = [1, 1]} : vector<8x256xf32> to vector<8x64xf32>
    %307 = math.tanh %306 : vector<8x64xf32>
    %308 = vector.extract_strided_slice %293 {offsets = [0, 192], sizes = [8, 64], strides = [1, 1]} : vector<8x256xf32> to vector<8x64xf32>
    %309 = arith.negf %308 : vector<8x64xf32>
    %310 = math.exp %309 : vector<8x64xf32>
    %cst_97 = arith.constant 1.000000e+00 : f32
    %311 = vector.broadcast %cst_97 : f32 to vector<8x64xf32>
    %312 = arith.addf %311, %310 : vector<8x64xf32>
    %313 = arith.divf %311, %312 : vector<8x64xf32>
    %314 = arith.mulf %305, %287 : vector<8x64xf32>
    %315 = arith.mulf %299, %307 : vector<8x64xf32>
    %316 = arith.addf %314, %315 : vector<8x64xf32>
    %317 = math.tanh %316 : vector<8x64xf32>
    %318 = arith.mulf %313, %317 : vector<8x64xf32>
    %c9 = arith.constant 9 : index
    %c0_98 = arith.constant 0 : index
    %c0_99 = arith.constant 0 : index
    %319 = vector.load %arg12[%c9, %c0_98, %c0_99] : memref<12x8x256xf32, #tpu.memory_space<vmem>>, vector<1x8x256xf32>
    %320 = vector.shape_cast %319 : vector<1x8x256xf32> to vector<8x256xf32>
    %cst_100 = arith.constant dense<0.000000e+00> : vector<8x256xf32>
    %321 = tpu.matmul %318, %55, %cst_100 {dimension_numbers = #tpu.dot_dimension_numbers<[1], [0], [0], [1], [0, 0, 1, 1], [], []>} : vector<8x64xf32>, vector<64x256xf32>, vector<8x256xf32> -> vector<8x256xf32>
    %322 = arith.addf %320, %321 : vector<8x256xf32>
    %323 = vector.extract_strided_slice %322 {offsets = [0, 0], sizes = [8, 64], strides = [1, 1]} : vector<8x256xf32> to vector<8x64xf32>
    %324 = arith.negf %323 : vector<8x64xf32>
    %325 = math.exp %324 : vector<8x64xf32>
    %cst_101 = arith.constant 1.000000e+00 : f32
    %326 = vector.broadcast %cst_101 : f32 to vector<8x64xf32>
    %327 = arith.addf %326, %325 : vector<8x64xf32>
    %328 = arith.divf %326, %327 : vector<8x64xf32>
    %329 = vector.extract_strided_slice %322 {offsets = [0, 64], sizes = [8, 64], strides = [1, 1]} : vector<8x256xf32> to vector<8x64xf32>
    %330 = arith.negf %329 : vector<8x64xf32>
    %331 = math.exp %330 : vector<8x64xf32>
    %cst_102 = arith.constant 1.000000e+00 : f32
    %332 = vector.broadcast %cst_102 : f32 to vector<8x64xf32>
    %333 = arith.addf %332, %331 : vector<8x64xf32>
    %334 = arith.divf %332, %333 : vector<8x64xf32>
    %335 = vector.extract_strided_slice %322 {offsets = [0, 128], sizes = [8, 64], strides = [1, 1]} : vector<8x256xf32> to vector<8x64xf32>
    %336 = math.tanh %335 : vector<8x64xf32>
    %337 = vector.extract_strided_slice %322 {offsets = [0, 192], sizes = [8, 64], strides = [1, 1]} : vector<8x256xf32> to vector<8x64xf32>
    %338 = arith.negf %337 : vector<8x64xf32>
    %339 = math.exp %338 : vector<8x64xf32>
    %cst_103 = arith.constant 1.000000e+00 : f32
    %340 = vector.broadcast %cst_103 : f32 to vector<8x64xf32>
    %341 = arith.addf %340, %339 : vector<8x64xf32>
    %342 = arith.divf %340, %341 : vector<8x64xf32>
    %343 = arith.mulf %334, %316 : vector<8x64xf32>
    %344 = arith.mulf %328, %336 : vector<8x64xf32>
    %345 = arith.addf %343, %344 : vector<8x64xf32>
    %346 = math.tanh %345 : vector<8x64xf32>
    %347 = arith.mulf %342, %346 : vector<8x64xf32>
    %c10 = arith.constant 10 : index
    %c0_104 = arith.constant 0 : index
    %c0_105 = arith.constant 0 : index
    %348 = vector.load %arg12[%c10, %c0_104, %c0_105] : memref<12x8x256xf32, #tpu.memory_space<vmem>>, vector<1x8x256xf32>
    %349 = vector.shape_cast %348 : vector<1x8x256xf32> to vector<8x256xf32>
    %cst_106 = arith.constant dense<0.000000e+00> : vector<8x256xf32>
    %350 = tpu.matmul %347, %55, %cst_106 {dimension_numbers = #tpu.dot_dimension_numbers<[1], [0], [0], [1], [0, 0, 1, 1], [], []>} : vector<8x64xf32>, vector<64x256xf32>, vector<8x256xf32> -> vector<8x256xf32>
    %351 = arith.addf %349, %350 : vector<8x256xf32>
    %352 = vector.extract_strided_slice %351 {offsets = [0, 0], sizes = [8, 64], strides = [1, 1]} : vector<8x256xf32> to vector<8x64xf32>
    %353 = arith.negf %352 : vector<8x64xf32>
    %354 = math.exp %353 : vector<8x64xf32>
    %cst_107 = arith.constant 1.000000e+00 : f32
    %355 = vector.broadcast %cst_107 : f32 to vector<8x64xf32>
    %356 = arith.addf %355, %354 : vector<8x64xf32>
    %357 = arith.divf %355, %356 : vector<8x64xf32>
    %358 = vector.extract_strided_slice %351 {offsets = [0, 64], sizes = [8, 64], strides = [1, 1]} : vector<8x256xf32> to vector<8x64xf32>
    %359 = arith.negf %358 : vector<8x64xf32>
    %360 = math.exp %359 : vector<8x64xf32>
    %cst_108 = arith.constant 1.000000e+00 : f32
    %361 = vector.broadcast %cst_108 : f32 to vector<8x64xf32>
    %362 = arith.addf %361, %360 : vector<8x64xf32>
    %363 = arith.divf %361, %362 : vector<8x64xf32>
    %364 = vector.extract_strided_slice %351 {offsets = [0, 128], sizes = [8, 64], strides = [1, 1]} : vector<8x256xf32> to vector<8x64xf32>
    %365 = math.tanh %364 : vector<8x64xf32>
    %366 = vector.extract_strided_slice %351 {offsets = [0, 192], sizes = [8, 64], strides = [1, 1]} : vector<8x256xf32> to vector<8x64xf32>
    %367 = arith.negf %366 : vector<8x64xf32>
    %368 = math.exp %367 : vector<8x64xf32>
    %cst_109 = arith.constant 1.000000e+00 : f32
    %369 = vector.broadcast %cst_109 : f32 to vector<8x64xf32>
    %370 = arith.addf %369, %368 : vector<8x64xf32>
    %371 = arith.divf %369, %370 : vector<8x64xf32>
    %372 = arith.mulf %363, %345 : vector<8x64xf32>
    %373 = arith.mulf %357, %365 : vector<8x64xf32>
    %374 = arith.addf %372, %373 : vector<8x64xf32>
    %375 = math.tanh %374 : vector<8x64xf32>
    %376 = arith.mulf %371, %375 : vector<8x64xf32>
    %c11 = arith.constant 11 : index
    %c0_110 = arith.constant 0 : index
    %c0_111 = arith.constant 0 : index
    %377 = vector.load %arg12[%c11, %c0_110, %c0_111] : memref<12x8x256xf32, #tpu.memory_space<vmem>>, vector<1x8x256xf32>
    %378 = vector.shape_cast %377 : vector<1x8x256xf32> to vector<8x256xf32>
    %cst_112 = arith.constant dense<0.000000e+00> : vector<8x256xf32>
    %379 = tpu.matmul %376, %55, %cst_112 {dimension_numbers = #tpu.dot_dimension_numbers<[1], [0], [0], [1], [0, 0, 1, 1], [], []>} : vector<8x64xf32>, vector<64x256xf32>, vector<8x256xf32> -> vector<8x256xf32>
    %380 = arith.addf %378, %379 : vector<8x256xf32>
    %381 = vector.extract_strided_slice %380 {offsets = [0, 0], sizes = [8, 64], strides = [1, 1]} : vector<8x256xf32> to vector<8x64xf32>
    %382 = arith.negf %381 : vector<8x64xf32>
    %383 = math.exp %382 : vector<8x64xf32>
    %cst_113 = arith.constant 1.000000e+00 : f32
    %384 = vector.broadcast %cst_113 : f32 to vector<8x64xf32>
    %385 = arith.addf %384, %383 : vector<8x64xf32>
    %386 = arith.divf %384, %385 : vector<8x64xf32>
    %387 = vector.extract_strided_slice %380 {offsets = [0, 64], sizes = [8, 64], strides = [1, 1]} : vector<8x256xf32> to vector<8x64xf32>
    %388 = arith.negf %387 : vector<8x64xf32>
    %389 = math.exp %388 : vector<8x64xf32>
    %cst_114 = arith.constant 1.000000e+00 : f32
    %390 = vector.broadcast %cst_114 : f32 to vector<8x64xf32>
    %391 = arith.addf %390, %389 : vector<8x64xf32>
    %392 = arith.divf %390, %391 : vector<8x64xf32>
    %393 = vector.extract_strided_slice %380 {offsets = [0, 128], sizes = [8, 64], strides = [1, 1]} : vector<8x256xf32> to vector<8x64xf32>
    %394 = math.tanh %393 : vector<8x64xf32>
    %395 = vector.extract_strided_slice %380 {offsets = [0, 192], sizes = [8, 64], strides = [1, 1]} : vector<8x256xf32> to vector<8x64xf32>
    %396 = arith.negf %395 : vector<8x64xf32>
    %397 = math.exp %396 : vector<8x64xf32>
    %cst_115 = arith.constant 1.000000e+00 : f32
    %398 = vector.broadcast %cst_115 : f32 to vector<8x64xf32>
    %399 = arith.addf %398, %397 : vector<8x64xf32>
    %400 = arith.divf %398, %399 : vector<8x64xf32>
    %401 = arith.mulf %392, %374 : vector<8x64xf32>
    %402 = arith.mulf %386, %394 : vector<8x64xf32>
    %403 = arith.addf %401, %402 : vector<8x64xf32>
    %404 = math.tanh %403 : vector<8x64xf32>
    %405 = arith.mulf %400, %404 : vector<8x64xf32>
    %c0_116 = arith.constant 0 : index
    %c0_117 = arith.constant 0 : index
    %406 = vector.load %arg9[%c0_116, %c0_117] : memref<64x2xf32, #tpu.memory_space<vmem>>, vector<64x2xf32>
    %cst_118 = arith.constant dense<0.000000e+00> : vector<8x2xf32>
    %407 = tpu.matmul %405, %406, %cst_118 {dimension_numbers = #tpu.dot_dimension_numbers<[1], [0], [0], [1], [0, 0, 1, 1], [], []>} : vector<8x64xf32>, vector<64x2xf32>, vector<8x2xf32> -> vector<8x2xf32>
    %c0_119 = arith.constant 0 : index
    %c0_120 = arith.constant 0 : index
    %408 = vector.load %arg10[%c0_119, %c0_120] : memref<1x2xf32, #tpu.memory_space<vmem>>, vector<1x2xf32>
    %409 = vector.broadcast %408 : vector<1x2xf32> to vector<8x2xf32>
    %410 = arith.addf %407, %409 : vector<8x2xf32>
    %c0_121 = arith.constant 0 : index
    %c0_122 = arith.constant 0 : index
    %411 = vector.load %arg11[%c0_121, %c0_122] : memref<8x2xf32, #tpu.memory_space<vmem>>, vector<8x2xf32>
    tpu.vector_store %arg11[%c0_121, %c0_122], %410 {strides = array<i32>} : memref<8x2xf32, #tpu.memory_space<vmem>>, vector<8x2xf32>,
    return
  }
  func.func @transform_0(%arg0: i32) -> (i32, i32, i32) {
    %c0_i32 = arith.constant 0 : i32
    %c0_i32_0 = arith.constant 0 : i32
    %c0_i32_1 = arith.constant 0 : i32
    return %c0_i32, %arg0, %c0_i32_0 : i32, i32, i32
  }
  func.func @transform_1(%arg0: i32) -> (i32, i32, i32) {
    %c0_i32 = arith.constant 0 : i32
    %c0_i32_0 = arith.constant 0 : i32
    %c0_i32_1 = arith.constant 0 : i32
    %c0_i32_2 = arith.constant 0 : i32
    return %c0_i32, %c0_i32_0, %c0_i32_1 : i32, i32, i32
  }
  func.func @transform_2(%arg0: i32) -> (i32, i32) {
    %c0_i32 = arith.constant 0 : i32
    %c0_i32_0 = arith.constant 0 : i32
    %c0_i32_1 = arith.constant 0 : i32
    return %c0_i32, %c0_i32_0 : i32, i32
  }
  func.func @transform_3(%arg0: i32) -> (i32, i32, i32) {
    %c0_i32 = arith.constant 0 : i32
    %c0_i32_0 = arith.constant 0 : i32
    %c0_i32_1 = arith.constant 0 : i32
    %c0_i32_2 = arith.constant 0 : i32
    return %c0_i32, %c0_i32_0, %c0_i32_1 : i32, i32, i32
  }
  func.func @transform_4(%arg0: i32) -> (i32, i32) {
    %c0_i32 = arith.constant 0 : i32
    %c0_i32_0 = arith.constant 0 : i32
    %c0_i32_1 = arith.constant 0 : i32
    return %c0_i32, %c0_i32_0 : i32, i32
  }
  func.func @transform_5(%arg0: i32) -> (i32, i32) {
    %c0_i32 = arith.constant 0 : i32
    %c0_i32_0 = arith.constant 0 : i32
    %c0_i32_1 = arith.constant 0 : i32
    return %c0_i32, %c0_i32_0 : i32, i32
  }
  func.func @transform_6(%arg0: i32) -> (i32, i32) {
    %c0_i32 = arith.constant 0 : i32
    %c0_i32_0 = arith.constant 0 : i32
    %c0_i32_1 = arith.constant 0 : i32
    return %c0_i32, %c0_i32_0 : i32, i32
  }
  func.func @transform_7(%arg0: i32) -> (i32, i32) {
    %c0_i32 = arith.constant 0 : i32
    %c0_i32_0 = arith.constant 0 : i32
    %c0_i32_1 = arith.constant 0 : i32
    return %c0_i32, %c0_i32_0 : i32, i32
  }
  func.func @transform_8(%arg0: i32) -> (i32, i32) {
    %c0_i32 = arith.constant 0 : i32
    %c0_i32_0 = arith.constant 0 : i32
    %c0_i32_1 = arith.constant 0 : i32
    return %c0_i32, %c0_i32_0 : i32, i32
  }
  func.func @transform_9(%arg0: i32) -> (i32, i32) {
    %c0_i32 = arith.constant 0 : i32
    %c0_i32_0 = arith.constant 0 : i32
    %c0_i32_1 = arith.constant 0 : i32
    return %c0_i32, %c0_i32_0 : i32, i32
  }
  func.func @transform_10(%arg0: i32) -> (i32, i32) {
    %c0_i32 = arith.constant 0 : i32
    %c0_i32_0 = arith.constant 0 : i32
    return %arg0, %c0_i32 : i32, i32
  }
}

</mosaic_0001>

<llo_original>
// kernel: tpu_custom_call.1
$region0: #{tpu_custom_call.1}
  #allocation0 [shape = 'u32[]', space=smem, size = 0x4, offset = 0x4, fixed_abs, tag = 'smem constant byte address 0x4 - core index']
  #allocation1 [shape = 'u32[72,128]{1,0:T(1,128)}', space=vmem, size = 0x9000, scoped, tag = 'internal scratch']
  #allocation2 [shape = 'f32[12,8,256]{2,1,0:T(8,128)}', space=vmem, size = 0x18000, scoped, tag = 'scratch operand']
  %s0 = inlined_call_operand.vmem [shape: f32[16,8,4], index: 0, kind: input, shape index: {}]
  %s1 = inlined_call_operand.hbm [shape: f32[3,4,16], index: 1, kind: input, shape index: {}]
  %s2 = inlined_call_operand.hbm [shape: f32[1,16], index: 2, kind: input, shape index: {}]
  %s3 = inlined_call_operand.hbm [shape: f32[3,16,32], index: 3, kind: input, shape index: {}]
  %s4 = inlined_call_operand.vmem [shape: f32[1,32], index: 4, kind: input, shape index: {}]
  %s5 = inlined_call_operand.vmem [shape: f32[32,256], index: 5, kind: input, shape index: {}]
  %s6 = inlined_call_operand.vmem [shape: f32[64,256], index: 6, kind: input, shape index: {}]
  %s7 = inlined_call_operand.vmem [shape: f32[1,256], index: 7, kind: input, shape index: {}]
  %s8 = inlined_call_operand.vmem [shape: f32[64,2], index: 8, kind: input, shape index: {}]
  %s9 = inlined_call_operand.vmem [shape: f32[1,2], index: 9, kind: input, shape index: {}]
  %s10 = inlined_call_operand.vmem [shape: f32[8,2], index: 10, kind: output, shape index: {}]
  %s11 = sld [smem:[#allocation0]]
  $region62: #{tpu_custom_call.1} parent=0
    _
  %s13 = ssub.s32 1, %s11
  %s14 = scalar_select 0, %s13, %s11
  $region1: #{tpu_custom_call.1} parent=0
    #allocation3 [shape = 'u8[6144]{0}', space=vmem, size = 0x1800, scoped, tag = 'input window, operand 1, single buffered']
    #allocation4 [shape = 's32[1]{0}', space=sflag, size = 0x4, scoped, tag = 'scoped memory for tpu_custom_call.1']
    #allocation5 [shape = 'u8[512]{0}', space=vmem, size = 0x400, scoped, tag = 'input window, operand 2, single buffered']
    #allocation6 [shape = 's32[1]{0}', space=sflag, size = 0x4, scoped, tag = 'scoped memory for tpu_custom_call.1']
    #allocation7 [shape = 'u8[24576]{0}', space=vmem, size = 0x6000, scoped, tag = 'input window, operand 3, single buffered']
    %15 = vsyncpa [#allocation4], 0
    %16 = vsyncpa [#allocation6], 0
    // Predicated region
    $region2: #{tpu_custom_call.1} parent=1 // pred_check
      _
    $region3: #{tpu_custom_call.1} parent=1 // pred_check_branch
      %18 = sbr.rel (0) target = $region5
    $region4: #{tpu_custom_call.1} parent=1 // pred_region
      _
    $region5: #{tpu_custom_call.1} parent=1 // pred_fallthru
      _
    // Predicated region
    $region6: #{tpu_custom_call.1} parent=1 // pred_check
      _
    $region7: #{tpu_custom_call.1} parent=1 // pred_check_branch
      %20 = sbr.rel (0) target = $region9
    $region8: #{tpu_custom_call.1} parent=1 // pred_region
      %22 = vsyncadd [#allocation4], 0
      %s23 = sshll.u32 %s1, 4
      %s24 = int_to_ptr.hbm [resolvable:$true] %s23
      %s25 = sshll.u32 [#allocation3], 4
      %s26 = int_to_ptr.vmem [resolvable:$true] %s25
      %31 = dma.hbm_to_vmem [thread:$0]  %s24, 192, %s26, [#allocation4], 64, 64, 4
    $region9: #{tpu_custom_call.1} parent=1 // pred_fallthru
      _
    // Predicated region
    $region10: #{tpu_custom_call.1} parent=1 // pred_check
      _
    $region11: #{tpu_custom_call.1} parent=1 // pred_check_branch
      %33 = sbr.rel (0) target = $region13
    $region12: #{tpu_custom_call.1} parent=1 // pred_region
      %35 = vsyncadd [#allocation6], 0
      %s37 = sshll.u32 %s2, 4
      %s38 = int_to_ptr.hbm [resolvable:$true] %s37
      %s39 = sshll.u32 [#allocation5], 4
      %s40 = int_to_ptr.vmem [resolvable:$true] %s39
      %42 = dma.hbm_to_vmem [thread:$0]  %s38, 16, %s40, [#allocation6]
    $region13: #{tpu_custom_call.1} parent=1 // pred_fallthru
      _
    // Predicated region
    $region14: #{tpu_custom_call.1} parent=1 // pred_check
      _
    $region15: #{tpu_custom_call.1} parent=1 // pred_check_branch
      %44 = sbr.rel (0) target = $region17
    $region16: #{tpu_custom_call.1} parent=1 // pred_region
      %46 = vsyncadd [#allocation6], 0
      %s47 = sshll.u32 %s3, 4
      %s48 = int_to_ptr.hbm [resolvable:$true] %s47
      %s49 = sshll.u32 [#allocation7], 4
      %s50 = int_to_ptr.vmem [resolvable:$true] %s49
      %55 = dma.hbm_to_vmem [thread:$0]  %s48, 768, %s50, [#allocation6], 128, 128, 8
    $region17: #{tpu_custom_call.1} parent=1 // pred_fallthru
      _
    // Predicated region
    $region18: #{tpu_custom_call.1} parent=1 // pred_check
      _
    $region19: #{tpu_custom_call.1} parent=1 // pred_check_branch
      %57 = sbr.rel (0) target = $region21
    $region20: #{tpu_custom_call.1} parent=1 // pred_region
      _
    $region21: #{tpu_custom_call.1} parent=1 // pred_fallthru
      _
    // Predicated region
    $region22: #{tpu_custom_call.1} parent=1 // pred_check
      _
    $region23: #{tpu_custom_call.1} parent=1 // pred_check_branch
      %59 = sbr.rel (0) target = $region25
    $region24: #{tpu_custom_call.1} parent=1 // pred_region
      _
    $region25: #{tpu_custom_call.1} parent=1 // pred_fallthru
      _
    // Predicated region
    $region26: #{tpu_custom_call.1} parent=1 // pred_check
      _
    $region27: #{tpu_custom_call.1} parent=1 // pred_check_branch
      %61 = sbr.rel (0) target = $region29
    $region28: #{tpu_custom_call.1} parent=1 // pred_region
      _
    $region29: #{tpu_custom_call.1} parent=1 // pred_fallthru
      _
    // Predicated region
    $region30: #{tpu_custom_call.1} parent=1 // pred_check
      _
    $region31: #{tpu_custom_call.1} parent=1 // pred_check_branch
      %63 = sbr.rel (0) target = $region33
    $region32: #{tpu_custom_call.1} parent=1 // pred_region
      _
    $region33: #{tpu_custom_call.1} parent=1 // pred_fallthru
      _
    // Predicated region
    $region34: #{tpu_custom_call.1} parent=1 // pred_check
      _
    $region35: #{tpu_custom_call.1} parent=1 // pred_check_branch
      %65 = sbr.rel (0) target = $region37
    $region36: #{tpu_custom_call.1} parent=1 // pred_region
      _
    $region37: #{tpu_custom_call.1} parent=1 // pred_fallthru
      _
    // Predicated region
    $region38: #{tpu_custom_call.1} parent=1 // pred_check
      _
    $region39: #{tpu_custom_call.1} parent=1 // pred_check_branch
      %67 = sbr.rel (0) target = $region41
    $region40: #{tpu_custom_call.1} parent=1 // pred_region
      _
    $region41: #{tpu_custom_call.1} parent=1 // pred_fallthru
      _
    // Predicated region
    $region42: #{tpu_custom_call.1} parent=1 // pred_check
      _
    $region43: #{tpu_custom_call.1} parent=1 // pred_check_branch
      %69 = sbr.rel (0) target = $region45
    $region44: #{tpu_custom_call.1} parent=1 // pred_region
      %71 = dma.done [#allocation4], 192
    $region45: #{tpu_custom_call.1} parent=1 // pred_fallthru
      _
    // Predicated region
    $region46: #{tpu_custom_call.1} parent=1 // pred_check
      _
    $region47: #{tpu_custom_call.1} parent=1 // pred_check_branch
      %73 = sbr.rel (0) target = $region49
    $region48: #{tpu_custom_call.1} parent=1 // pred_region
      %75 = dma.done [#allocation6], 16
    $region49: #{tpu_custom_call.1} parent=1 // pred_fallthru
      _
    // Predicated region
    $region50: #{tpu_custom_call.1} parent=1 // pred_check
      _
    $region51: #{tpu_custom_call.1} parent=1 // pred_check_branch
      %77 = sbr.rel (0) target = $region53
    $region52: #{tpu_custom_call.1} parent=1 // pred_region
      %79 = dma.done [#allocation6], 768
    $region53: #{tpu_custom_call.1} parent=1 // pred_fallthru
      _
    %v80 = vld [vmem:[%s0] sm:$0xff]
    %v81 = vld [vmem:[%s0 + $0x8] sm:$0xff]
    %v82 = vld [vmem:[%s0 + $0x10] sm:$0xff]
    %v83 = vld [vmem:[%s0 + $0x18] sm:$0xff]
    %v84 = vld [vmem:[%s0 + $0x20] sm:$0xff]
    %v85 = vld [vmem:[%s0 + $0x28] sm:$0xff]
    %v86 = vld [vmem:[%s0 + $0x30] sm:$0xff]
    %v87 = vld [vmem:[%s0 + $0x38] sm:$0xff]
    %v88 = vld [vmem:[%s0 + $0x40] sm:$0xff]
    %v89 = vld [vmem:[%s0 + $0x48] sm:$0xff]
    %v90 = vld [vmem:[%s0 + $0x50] sm:$0xff]
    %v91 = vld [vmem:[%s0 + $0x58] sm:$0xff]
    %v92 = vld [vmem:[%s0 + $0x60] sm:$0xff]
    %v93 = vld [vmem:[%s0 + $0x68] sm:$0xff]
    %v94 = vld [vmem:[%s0 + $0x70] sm:$0xff]
    %v95 = vld [vmem:[%s0 + $0x78] sm:$0xff]
    %v96 = vld [vmem:[#allocation5] sm:$0x1]
    %v98 = vperm.slane %v96, 0
    %v100 = vld [vmem:[#allocation3] sm:$0xf]
    %vm101 = vcmask 31744
    %v103 = vsel %vm101, %v80, 0
    %v106 = vsel %vm101, %v81, 0
    %v109 = vsel %vm101, %v82, 0
    %v112 = vsel %vm101, %v83, 0
    %v115 = vsel %vm101, %v84, 0
    %v118 = vsel %vm101, %v85, 0
    %v121 = vsel %vm101, %v86, 0
    %v124 = vsel %vm101, %v87, 0
    %v127 = vsel %vm101, %v88, 0
    %v130 = vsel %vm101, %v89, 0
    %v133 = vsel %vm101, %v90, 0
    %v136 = vsel %vm101, %v91, 0
    %v139 = vsel %vm101, %v92, 0
    %v142 = vsel %vm101, %v93, 0
    %vm144 = vcmask 1043456
    %v146 = vsel %vm144, %v100, 0
    %148 = vmatpush.msra.mxu0 0.0
    %149 = vmatpush.msra.mxu0 0.0
    %150 = vmatpush.msra.mxu0 0.0
    %151 = vmatpush.msra.mxu0 0.0
    %152 = vmatpush.msra.mxu0 0.0
    %153 = vmatpush.msra.mxu0 0.0
    %154 = vmatpush.msra.mxu0 0.0
    %155 = vmatpush.msra.mxu0 0.0
    %156 = vmatpush.msra.mxu0 0.0
    %157 = vmatpush.msra.mxu0 0.0
    %158 = vmatpush.msra.mxu0 0.0
    %159 = vmatpush.msra.mxu0 0.0
    %160 = vmatpush.msra.mxu0 0.0
    %161 = vmatpush.msra.mxu0 0.0
    %162 = vmatpush.msra.mxu0 0.0
    %163 = vmatpush.msra.mxu0 %v146
    %164 = vmatmul.f32.gmra.mxu0 %v103
    %v165 = vpop.f32.mrf.mxu0
    %v166 = vadd.f32 0.0, %v165
    %167 = vmatmul.f32.gmra.mxu0 %v106
    %v168 = vpop.f32.mrf.mxu0
    %v169 = vadd.f32 0.0, %v168
    %170 = vmatmul.f32.gmra.mxu0 %v109
    %v171 = vpop.f32.mrf.mxu0
    %v172 = vadd.f32 0.0, %v171
    %173 = vmatmul.f32.gmra.mxu0 %v112
    %v174 = vpop.f32.mrf.mxu0
    %v175 = vadd.f32 0.0, %v174
    %176 = vmatmul.f32.gmra.mxu0 %v115
    %v177 = vpop.f32.mrf.mxu0
    %v178 = vadd.f32 0.0, %v177
    %179 = vmatmul.f32.gmra.mxu0 %v118
    %v180 = vpop.f32.mrf.mxu0
    %v181 = vadd.f32 0.0, %v180
    %182 = vmatmul.f32.gmra.mxu0 %v121
    %v183 = vpop.f32.mrf.mxu0
    %v184 = vadd.f32 0.0, %v183
    %185 = vmatmul.f32.gmra.mxu0 %v124
    %v186 = vpop.f32.mrf.mxu0
    %v187 = vadd.f32 0.0, %v186
    %188 = vmatmul.f32.gmra.mxu0 %v127
    %v189 = vpop.f32.mrf.mxu0
    %v190 = vadd.f32 0.0, %v189
    %191 = vmatmul.f32.gmra.mxu0 %v130
    %v192 = vpop.f32.mrf.mxu0
    %v193 = vadd.f32 0.0, %v192
    %194 = vmatmul.f32.gmra.mxu0 %v133
    %v195 = vpop.f32.mrf.mxu0
    %v196 = vadd.f32 0.0, %v195
    %197 = vmatmul.f32.gmra.mxu0 %v136
    %v198 = vpop.f32.mrf.mxu0
    %v199 = vadd.f32 0.0, %v198
    %200 = vmatmul.f32.gmra.mxu0 %v139
    %v201 = vpop.f32.mrf.mxu0
    %v202 = vadd.f32 0.0, %v201
    %203 = vmatmul.f32.gmra.mxu0 %v142
    %v204 = vpop.f32.mrf.mxu0
    %v205 = vadd.f32 0.0, %v204
    %206 = vdwg.mxu0
    %v207 = vadd.f32 %v98, %v166
    %v208 = vadd.f32 %v98, %v169
    %v209 = vadd.f32 %v98, %v172
    %v210 = vadd.f32 %v98, %v175
    %v211 = vadd.f32 %v98, %v178
    %v212 = vadd.f32 %v98, %v181
    %v213 = vadd.f32 %v98, %v184
    %v214 = vadd.f32 %v98, %v187
    %v215 = vadd.f32 %v98, %v190
    %v216 = vadd.f32 %v98, %v193
    %v217 = vadd.f32 %v98, %v196
    %v218 = vadd.f32 %v98, %v199
    %v219 = vadd.f32 %v98, %v202
    %v220 = vadd.f32 %v98, %v205
    %s221 = scalar_lea.vmem [#allocation3], 4
    %v222 = vld [vmem:[%s221] sm:$0xf]
    %v224 = vsel %vm101, %v94, 0
    %v227 = vsel %vm144, %v222, 0
    %229 = vmatpush.msra.mxu0 0.0
    %230 = vmatpush.msra.mxu0 0.0
    %231 = vmatpush.msra.mxu0 0.0
    %232 = vmatpush.msra.mxu0 0.0
    %233 = vmatpush.msra.mxu0 0.0
    %234 = vmatpush.msra.mxu0 0.0
    %235 = vmatpush.msra.mxu0 0.0
    %236 = vmatpush.msra.mxu0 0.0
    %237 = vmatpush.msra.mxu0 0.0
    %238 = vmatpush.msra.mxu0 0.0
    %239 = vmatpush.msra.mxu0 0.0
    %240 = vmatpush.msra.mxu0 0.0
    %241 = vmatpush.msra.mxu0 0.0
    %242 = vmatpush.msra.mxu0 0.0
    %243 = vmatpush.msra.mxu0 0.0
    %244 = vmatpush.msra.mxu0 %v227
    %245 = vmatmul.f32.gmra.mxu0 %v106
    %v246 = vpop.f32.mrf.mxu0
    %v247 = vadd.f32 0.0, %v246
    %248 = vmatmul.f32.gmra.mxu0 %v109
    %v249 = vpop.f32.mrf.mxu0
    %v250 = vadd.f32 0.0, %v249
    %251 = vmatmul.f32.gmra.mxu0 %v112
    %v252 = vpop.f32.mrf.mxu0
    %v253 = vadd.f32 0.0, %v252
    %254 = vmatmul.f32.gmra.mxu0 %v115
    %v255 = vpop.f32.mrf.mxu0
    %v256 = vadd.f32 0.0, %v255
    %257 = vmatmul.f32.gmra.mxu0 %v118
    %v258 = vpop.f32.mrf.mxu0
    %v259 = vadd.f32 0.0, %v258
    %260 = vmatmul.f32.gmra.mxu0 %v121
    %v261 = vpop.f32.mrf.mxu0
    %v262 = vadd.f32 0.0, %v261
    %263 = vmatmul.f32.gmra.mxu0 %v124
    %v264 = vpop.f32.mrf.mxu0
    %v265 = vadd.f32 0.0, %v264
    %266 = vmatmul.f32.gmra.mxu0 %v127
    %v267 = vpop.f32.mrf.mxu0
    %v268 = vadd.f32 0.0, %v267
    %269 = vmatmul.f32.gmra.mxu0 %v130
    %v270 = vpop.f32.mrf.mxu0
    %v271 = vadd.f32 0.0, %v270
    %272 = vmatmul.f32.gmra.mxu0 %v133
    %v273 = vpop.f32.mrf.mxu0
    %v274 = vadd.f32 0.0, %v273
    %275 = vmatmul.f32.gmra.mxu0 %v136
    %v276 = vpop.f32.mrf.mxu0
    %v277 = vadd.f32 0.0, %v276
    %278 = vmatmul.f32.gmra.mxu0 %v139
    %v279 = vpop.f32.mrf.mxu0
    %v280 = vadd.f32 0.0, %v279
    %281 = vmatmul.f32.gmra.mxu0 %v142
    %v282 = vpop.f32.mrf.mxu0
    %v283 = vadd.f32 0.0, %v282
    %284 = vmatmul.f32.gmra.mxu0 %v224
    %v285 = vpop.f32.mrf.mxu0
    %v286 = vadd.f32 0.0, %v285
    %287 = vdwg.mxu0
    %v288 = vadd.f32 %v207, %v247
    %v289 = vadd.f32 %v208, %v250
    %v290 = vadd.f32 %v209, %v253
    %v291 = vadd.f32 %v210, %v256
    %v292 = vadd.f32 %v211, %v259
    %v293 = vadd.f32 %v212, %v262
    %v294 = vadd.f32 %v213, %v265
    %v295 = vadd.f32 %v214, %v268
    %v296 = vadd.f32 %v215, %v271
    %v297 = vadd.f32 %v216, %v274
    %v298 = vadd.f32 %v217, %v277
    %v299 = vadd.f32 %v218, %v280
    %v300 = vadd.f32 %v219, %v283
    %v301 = vadd.f32 %v220, %v286
    %s302 = scalar_lea.vmem [#allocation3], 8
    %v303 = vld [vmem:[%s302] sm:$0xf]
    %v305 = vsel %vm101, %v95, 0
    %v308 = vsel %vm144, %v303, 0
    %310 = vmatpush.msra.mxu0 0.0
    %311 = vmatpush.msra.mxu0 0.0
    %312 = vmatpush.msra.mxu0 0.0
    %313 = vmatpush.msra.mxu0 0.0
    %314 = vmatpush.msra.mxu0 0.0
    %315 = vmatpush.msra.mxu0 0.0
    %316 = vmatpush.msra.mxu0 0.0
    %317 = vmatpush.msra.mxu0 0.0
    %318 = vmatpush.msra.mxu0 0.0
    %319 = vmatpush.msra.mxu0 0.0
    %320 = vmatpush.msra.mxu0 0.0
    %321 = vmatpush.msra.mxu0 0.0
    %322 = vmatpush.msra.mxu0 0.0
    %323 = vmatpush.msra.mxu0 0.0
    %324 = vmatpush.msra.mxu0 0.0
    %325 = vmatpush.msra.mxu0 %v308
    %326 = vmatmul.f32.gmra.mxu0 %v109
    %v327 = vpop.f32.mrf.mxu0
    %v328 = vadd.f32 0.0, %v327
    %329 = vmatmul.f32.gmra.mxu0 %v112
    %v330 = vpop.f32.mrf.mxu0
    %v331 = vadd.f32 0.0, %v330
    %332 = vmatmul.f32.gmra.mxu0 %v115
    %v333 = vpop.f32.mrf.mxu0
    %v334 = vadd.f32 0.0, %v333
    %335 = vmatmul.f32.gmra.mxu0 %v118
    %v336 = vpop.f32.mrf.mxu0
    %v337 = vadd.f32 0.0, %v336
    %338 = vmatmul.f32.gmra.mxu0 %v121
    %v339 = vpop.f32.mrf.mxu0
    %v340 = vadd.f32 0.0, %v339
    %341 = vmatmul.f32.gmra.mxu0 %v124
    %v342 = vpop.f32.mrf.mxu0
    %v343 = vadd.f32 0.0, %v342
    %344 = vmatmul.f32.gmra.mxu0 %v127
    %v345 = vpop.f32.mrf.mxu0
    %v346 = vadd.f32 0.0, %v345
    %347 = vmatmul.f32.gmra.mxu0 %v130
    %v348 = vpop.f32.mrf.mxu0
    %v349 = vadd.f32 0.0, %v348
    %350 = vmatmul.f32.gmra.mxu0 %v133
    %v351 = vpop.f32.mrf.mxu0
    %v352 = vadd.f32 0.0, %v351
    %353 = vmatmul.f32.gmra.mxu0 %v136
    %v354 = vpop.f32.mrf.mxu0
    %v355 = vadd.f32 0.0, %v354
    %356 = vmatmul.f32.gmra.mxu0 %v139
    %v357 = vpop.f32.mrf.mxu0
    %v358 = vadd.f32 0.0, %v357
    %359 = vmatmul.f32.gmra.mxu0 %v142
    %v360 = vpop.f32.mrf.mxu0
    %v361 = vadd.f32 0.0, %v360
    %362 = vmatmul.f32.gmra.mxu0 %v224
    %v363 = vpop.f32.mrf.mxu0
    %v364 = vadd.f32 0.0, %v363
    %365 = vmatmul.f32.gmra.mxu0 %v305
    %v366 = vpop.f32.mrf.mxu0
    %v367 = vadd.f32 0.0, %v366
    %368 = vdwg.mxu0
    %v369 = vadd.f32 %v288, %v328
    %v370 = vadd.f32 %v289, %v331
    %v371 = vadd.f32 %v290, %v334
    %v372 = vadd.f32 %v291, %v337
    %v373 = vadd.f32 %v292, %v340
    %v374 = vadd.f32 %v293, %v343
    %v375 = vadd.f32 %v294, %v346
    %v376 = vadd.f32 %v295, %v349
    %v377 = vadd.f32 %v296, %v352
    %v378 = vadd.f32 %v297, %v355
    %v379 = vadd.f32 %v298, %v358
    %v380 = vadd.f32 %v299, %v361
    %v381 = vadd.f32 %v300, %v364
    %v382 = vadd.f32 %v301, %v367
    %v383 = vmax.f32 %v369, 0.0
    %v384 = vmax.f32 %v370, 0.0
    %v385 = vmax.f32 %v371, 0.0
    %v386 = vmax.f32 %v372, 0.0
    %v387 = vmax.f32 %v373, 0.0
    %v388 = vmax.f32 %v374, 0.0
    %v389 = vmax.f32 %v375, 0.0
    %v390 = vmax.f32 %v376, 0.0
    %v391 = vmax.f32 %v377, 0.0
    %v392 = vmax.f32 %v378, 0.0
    %v393 = vmax.f32 %v379, 0.0
    %v394 = vmax.f32 %v380, 0.0
    %v395 = vmax.f32 %v381, 0.0
    %v396 = vmax.f32 %v382, 0.0
    %v397 = vld [vmem:[%s4] sm:$0x1]
    %v399 = vperm.slane %v397, 0
    %v401 = vld [vmem:[#allocation7] sm:$0xff]
    %v402 = vld [vmem:[#allocation7 + $0x8] sm:$0xff]
    %vm403 = vcmask 130048
    %v405 = vsel %vm403, %v383, 0
    %v408 = vsel %vm403, %v384, 0
    %v411 = vsel %vm403, %v385, 0
    %v414 = vsel %vm403, %v386, 0
    %v417 = vsel %vm403, %v387, 0
    %v420 = vsel %vm403, %v388, 0
    %v423 = vsel %vm403, %v389, 0
    %v426 = vsel %vm403, %v390, 0
    %v429 = vsel %vm403, %v391, 0
    %v432 = vsel %vm403, %v392, 0
    %v435 = vsel %vm403, %v393, 0
    %v438 = vsel %vm403, %v394, 0
    %440 = vmatpush.msra.mxu0 0.0
    %441 = vmatpush.msra.mxu0 0.0
    %442 = vmatpush.msra.mxu0 0.0
    %443 = vmatpush.msra.mxu0 0.0
    %444 = vmatpush.msra.mxu0 0.0
    %445 = vmatpush.msra.mxu0 0.0
    %446 = vmatpush.msra.mxu0 0.0
    %447 = vmatpush.msra.mxu0 0.0
    %448 = vmatpush.msra.mxu0 0.0
    %449 = vmatpush.msra.mxu0 0.0
    %450 = vmatpush.msra.mxu0 0.0
    %451 = vmatpush.msra.mxu0 0.0
    %452 = vmatpush.msra.mxu0 0.0
    %453 = vmatpush.msra.mxu0 0.0
    %454 = vmatpush.msra.mxu0 %v402
    %455 = vmatpush.msra.mxu0 %v401
    %456 = vmatmul.f32.gmra.mxu0 %v405
    %v457 = vpop.f32.mrf.mxu0
    %v458 = vadd.f32 0.0, %v457
    %459 = vmatmul.f32.gmra.mxu0 %v408
    %v460 = vpop.f32.mrf.mxu0
    %v461 = vadd.f32 0.0, %v460
    %462 = vmatmul.f32.gmra.mxu0 %v411
    %v463 = vpop.f32.mrf.mxu0
    %v464 = vadd.f32 0.0, %v463
    %465 = vmatmul.f32.gmra.mxu0 %v414
    %v466 = vpop.f32.mrf.mxu0
    %v467 = vadd.f32 0.0, %v466
    %468 = vmatmul.f32.gmra.mxu0 %v417
    %v469 = vpop.f32.mrf.mxu0
    %v470 = vadd.f32 0.0, %v469
    %471 = vmatmul.f32.gmra.mxu0 %v420
    %v472 = vpop.f32.mrf.mxu0
    %v473 = vadd.f32 0.0, %v472
    %474 = vmatmul.f32.gmra.mxu0 %v423
    %v475 = vpop.f32.mrf.mxu0
    %v476 = vadd.f32 0.0, %v475
    %477 = vmatmul.f32.gmra.mxu0 %v426
    %v478 = vpop.f32.mrf.mxu0
    %v479 = vadd.f32 0.0, %v478
    %480 = vmatmul.f32.gmra.mxu0 %v429
    %v481 = vpop.f32.mrf.mxu0
    %v482 = vadd.f32 0.0, %v481
    %483 = vmatmul.f32.gmra.mxu0 %v432
    %v484 = vpop.f32.mrf.mxu0
    %v485 = vadd.f32 0.0, %v484
    %486 = vmatmul.f32.gmra.mxu0 %v435
    %v487 = vpop.f32.mrf.mxu0
    %v488 = vadd.f32 0.0, %v487
    %489 = vmatmul.f32.gmra.mxu0 %v438
    %v490 = vpop.f32.mrf.mxu0
    %v491 = vadd.f32 0.0, %v490
    %492 = vdwg.mxu0
    %v493 = vadd.f32 %v399, %v458
    %v494 = vadd.f32 %v399, %v461
    %v495 = vadd.f32 %v399, %v464
    %v496 = vadd.f32 %v399, %v467
    %v497 = vadd.f32 %v399, %v470
    %v498 = vadd.f32 %v399, %v473
    %v499 = vadd.f32 %v399, %v476
    %v500 = vadd.f32 %v399, %v479
    %v501 = vadd.f32 %v399, %v482
    %v502 = vadd.f32 %v399, %v485
    %v503 = vadd.f32 %v399, %v488
    %v504 = vadd.f32 %v399, %v491
    %s505 = scalar_lea.vmem [#allocation7], 16
    %v506 = vld [vmem:[%s505] sm:$0xff]
    %v507 = vld [vmem:[%s505 + $0x8] sm:$0xff]
    %v509 = vsel %vm403, %v395, 0
    %511 = vmatpush.msra.mxu0 0.0
    %512 = vmatpush.msra.mxu0 0.0
    %513 = vmatpush.msra.mxu0 0.0
    %514 = vmatpush.msra.mxu0 0.0
    %515 = vmatpush.msra.mxu0 0.0
    %516 = vmatpush.msra.mxu0 0.0
    %517 = vmatpush.msra.mxu0 0.0
    %518 = vmatpush.msra.mxu0 0.0
    %519 = vmatpush.msra.mxu0 0.0
    %520 = vmatpush.msra.mxu0 0.0
    %521 = vmatpush.msra.mxu0 0.0
    %522 = vmatpush.msra.mxu0 0.0
    %523 = vmatpush.msra.mxu0 0.0
    %524 = vmatpush.msra.mxu0 0.0
    %525 = vmatpush.msra.mxu0 %v507
    %526 = vmatpush.msra.mxu0 %v506
    %527 = vmatmul.f32.gmra.mxu0 %v408
    %v528 = vpop.f32.mrf.mxu0
    %v529 = vadd.f32 0.0, %v528
    %530 = vmatmul.f32.gmra.mxu0 %v411
    %v531 = vpop.f32.mrf.mxu0
    %v532 = vadd.f32 0.0, %v531
    %533 = vmatmul.f32.gmra.mxu0 %v414
    %v534 = vpop.f32.mrf.mxu0
    %v535 = vadd.f32 0.0, %v534
    %536 = vmatmul.f32.gmra.mxu0 %v417
    %v537 = vpop.f32.mrf.mxu0
    %v538 = vadd.f32 0.0, %v537
    %539 = vmatmul.f32.gmra.mxu0 %v420
    %v540 = vpop.f32.mrf.mxu0
    %v541 = vadd.f32 0.0, %v540
    %542 = vmatmul.f32.gmra.mxu0 %v423
    %v543 = vpop.f32.mrf.mxu0
    %v544 = vadd.f32 0.0, %v543
    %545 = vmatmul.f32.gmra.mxu0 %v426
    %v546 = vpop.f32.mrf.mxu0
    %v547 = vadd.f32 0.0, %v546
    %548 = vmatmul.f32.gmra.mxu0 %v429
    %v549 = vpop.f32.mrf.mxu0
    %v550 = vadd.f32 0.0, %v549
    %551 = vmatmul.f32.gmra.mxu0 %v432
    %v552 = vpop.f32.mrf.mxu0
    %v553 = vadd.f32 0.0, %v552
    %554 = vmatmul.f32.gmra.mxu0 %v435
    %v555 = vpop.f32.mrf.mxu0
    %v556 = vadd.f32 0.0, %v555
    %557 = vmatmul.f32.gmra.mxu0 %v438
    %v558 = vpop.f32.mrf.mxu0
    %v559 = vadd.f32 0.0, %v558
    %560 = vmatmul.f32.gmra.mxu0 %v509
    %v561 = vpop.f32.mrf.mxu0
    %v562 = vadd.f32 0.0, %v561
    %563 = vdwg.mxu0
    %v564 = vadd.f32 %v493, %v529
    %v565 = vadd.f32 %v494, %v532
    %v566 = vadd.f32 %v495, %v535
    %v567 = vadd.f32 %v496, %v538
    %v568 = vadd.f32 %v497, %v541
    %v569 = vadd.f32 %v498, %v544
    %v570 = vadd.f32 %v499, %v547
    %v571 = vadd.f32 %v500, %v550
    %v572 = vadd.f32 %v501, %v553
    %v573 = vadd.f32 %v502, %v556
    %v574 = vadd.f32 %v503, %v559
    %v575 = vadd.f32 %v504, %v562
    %s576 = scalar_lea.vmem [#allocation7], 32
    %v577 = vld [vmem:[%s576] sm:$0xff]
    %v578 = vld [vmem:[%s576 + $0x8] sm:$0xff]
    %v580 = vsel %vm403, %v396, 0
    %582 = vmatpush.msra.mxu0 0.0
    %583 = vmatpush.msra.mxu0 0.0
    %584 = vmatpush.msra.mxu0 0.0
    %585 = vmatpush.msra.mxu0 0.0
    %586 = vmatpush.msra.mxu0 0.0
    %587 = vmatpush.msra.mxu0 0.0
    %588 = vmatpush.msra.mxu0 0.0
    %589 = vmatpush.msra.mxu0 0.0
    %590 = vmatpush.msra.mxu0 0.0
    %591 = vmatpush.msra.mxu0 0.0
    %592 = vmatpush.msra.mxu0 0.0
    %593 = vmatpush.msra.mxu0 0.0
    %594 = vmatpush.msra.mxu0 0.0
    %595 = vmatpush.msra.mxu0 0.0
    %596 = vmatpush.msra.mxu0 %v578
    %597 = vmatpush.msra.mxu0 %v577
    %598 = vmatmul.f32.gmra.mxu0 %v411
    %v599 = vpop.f32.mrf.mxu0
    %v600 = vadd.f32 0.0, %v599
    %601 = vmatmul.f32.gmra.mxu0 %v414
    %v602 = vpop.f32.mrf.mxu0
    %v603 = vadd.f32 0.0, %v602
    %604 = vmatmul.f32.gmra.mxu0 %v417
    %v605 = vpop.f32.mrf.mxu0
    %v606 = vadd.f32 0.0, %v605
    %607 = vmatmul.f32.gmra.mxu0 %v420
    %v608 = vpop.f32.mrf.mxu0
    %v609 = vadd.f32 0.0, %v608
    %610 = vmatmul.f32.gmra.mxu0 %v423
    %v611 = vpop.f32.mrf.mxu0
    %v612 = vadd.f32 0.0, %v611
    %613 = vmatmul.f32.gmra.mxu0 %v426
    %v614 = vpop.f32.mrf.mxu0
    %v615 = vadd.f32 0.0, %v614
    %616 = vmatmul.f32.gmra.mxu0 %v429
    %v617 = vpop.f32.mrf.mxu0
    %v618 = vadd.f32 0.0, %v617
    %619 = vmatmul.f32.gmra.mxu0 %v432
    %v620 = vpop.f32.mrf.mxu0
    %v621 = vadd.f32 0.0, %v620
    %622 = vmatmul.f32.gmra.mxu0 %v435
    %v623 = vpop.f32.mrf.mxu0
    %v624 = vadd.f32 0.0, %v623
    %625 = vmatmul.f32.gmra.mxu0 %v438
    %v626 = vpop.f32.mrf.mxu0
    %v627 = vadd.f32 0.0, %v626
    %628 = vmatmul.f32.gmra.mxu0 %v509
    %v629 = vpop.f32.mrf.mxu0
    %v630 = vadd.f32 0.0, %v629
    %631 = vmatmul.f32.gmra.mxu0 %v580
    %v632 = vpop.f32.mrf.mxu0
    %v633 = vadd.f32 0.0, %v632
    %634 = vdwg.mxu0
    %v635 = vadd.f32 %v564, %v600
    %v636 = vadd.f32 %v565, %v603
    %v637 = vadd.f32 %v566, %v606
    %v638 = vadd.f32 %v567, %v609
    %v639 = vadd.f32 %v568, %v612
    %v640 = vadd.f32 %v569, %v615
    %v641 = vadd.f32 %v570, %v618
    %v642 = vadd.f32 %v571, %v621
    %v643 = vadd.f32 %v572, %v624
    %v644 = vadd.f32 %v573, %v627
    %v645 = vadd.f32 %v574, %v630
    %v646 = vadd.f32 %v575, %v633
    %v647 = vmax.f32 %v635, 0.0
    %v648 = vmax.f32 %v636, 0.0
    %v649 = vmax.f32 %v637, 0.0
    %v650 = vmax.f32 %v638, 0.0
    %v651 = vmax.f32 %v639, 0.0
    %v652 = vmax.f32 %v640, 0.0
    %v653 = vmax.f32 %v641, 0.0
    %v654 = vmax.f32 %v642, 0.0
    %v655 = vmax.f32 %v643, 0.0
    %v656 = vmax.f32 %v644, 0.0
    %v657 = vmax.f32 %v645, 0.0
    %v658 = vmax.f32 %v646, 0.0
    %v659 = vld [vmem:[%s5] sm:$0xff]
    %v660 = vld [vmem:[%s5 + $0x8] sm:$0xff]
    %v661 = vld [vmem:[%s5 + $0x10] sm:$0xff]
    %v662 = vld [vmem:[%s5 + $0x18] sm:$0xff]
    %v663 = vld [vmem:[%s5 + $0x20] sm:$0xff]
    %v664 = vld [vmem:[%s5 + $0x28] sm:$0xff]
    %v665 = vld [vmem:[%s5 + $0x30] sm:$0xff]
    %v666 = vld [vmem:[%s5 + $0x38] sm:$0xff]
    %v667 = vld [vmem:[%s7] sm:$0x3]
    %v669 = vperm.slane %v667, 0
    %v670 = vperm.slane %v667, 1
    %vm673 = vcmask 261120
    %v675 = vsel %vm673, %v647, 0
    %v678 = vsel %vm673, %v648, 0
    %v681 = vsel %vm673, %v649, 0
    %v684 = vsel %vm673, %v650, 0
    %v687 = vsel %vm673, %v651, 0
    %v690 = vsel %vm673, %v652, 0
    %v693 = vsel %vm673, %v653, 0
    %v696 = vsel %vm673, %v654, 0
    %v699 = vsel %vm673, %v655, 0
    %v702 = vsel %vm673, %v656, 0
    %v705 = vsel %vm673, %v657, 0
    %v708 = vsel %vm673, %v658, 0
    %710 = vmatpush.msra.mxu0 0.0
    %711 = vmatpush.msra.mxu0 0.0
    %712 = vmatpush.msra.mxu0 0.0
    %713 = vmatpush.msra.mxu0 0.0
    %714 = vmatpush.msra.mxu0 0.0
    %715 = vmatpush.msra.mxu0 0.0
    %716 = vmatpush.msra.mxu0 0.0
    %717 = vmatpush.msra.mxu0 0.0
    %718 = vmatpush.msra.mxu0 0.0
    %719 = vmatpush.msra.mxu0 0.0
    %720 = vmatpush.msra.mxu0 0.0
    %721 = vmatpush.msra.mxu0 0.0
    %722 = vmatpush.msra.mxu0 %v665
    %723 = vmatpush.msra.mxu0 %v663
    %724 = vmatpush.msra.mxu0 %v661
    %725 = vmatpush.msra.mxu0 %v659
    %726 = vmatmul.f32.gmra.mxu0 %v675
    %v727 = vpop.f32.mrf.mxu0
    %v728 = vadd.f32 %v669, %v727
    %729 = vmatmul.f32.gmra.mxu0 %v678
    %v730 = vpop.f32.mrf.mxu0
    %v731 = vadd.f32 %v669, %v730
    %732 = vmatmul.f32.gmra.mxu0 %v681
    %v733 = vpop.f32.mrf.mxu0
    %v734 = vadd.f32 %v669, %v733
    %735 = vmatmul.f32.gmra.mxu0 %v684
    %v736 = vpop.f32.mrf.mxu0
    %v737 = vadd.f32 %v669, %v736
    %738 = vmatmul.f32.gmra.mxu0 %v687
    %v739 = vpop.f32.mrf.mxu0
    %v740 = vadd.f32 %v669, %v739
    %741 = vmatmul.f32.gmra.mxu0 %v690
    %v742 = vpop.f32.mrf.mxu0
    %v743 = vadd.f32 %v669, %v742
    %744 = vmatmul.f32.gmra.mxu0 %v693
    %v745 = vpop.f32.mrf.mxu0
    %v746 = vadd.f32 %v669, %v745
    %747 = vmatmul.f32.gmra.mxu0 %v696
    %v748 = vpop.f32.mrf.mxu0
    %v749 = vadd.f32 %v669, %v748
    %750 = vmatmul.f32.gmra.mxu0 %v699
    %v751 = vpop.f32.mrf.mxu0
    %v752 = vadd.f32 %v669, %v751
    %753 = vmatmul.f32.gmra.mxu0 %v702
    %v754 = vpop.f32.mrf.mxu0
    %v755 = vadd.f32 %v669, %v754
    %756 = vmatmul.f32.gmra.mxu0 %v705
    %v757 = vpop.f32.mrf.mxu0
    %v758 = vadd.f32 %v669, %v757
    %759 = vmatmul.f32.gmra.mxu0 %v708
    %v760 = vpop.f32.mrf.mxu0
    %v761 = vadd.f32 %v669, %v760
    %762 = vdwg.mxu0
    %763 = vmatpush.msra.mxu0 0.0
    %764 = vmatpush.msra.mxu0 0.0
    %765 = vmatpush.msra.mxu0 0.0
    %766 = vmatpush.msra.mxu0 0.0
    %767 = vmatpush.msra.mxu0 0.0
    %768 = vmatpush.msra.mxu0 0.0
    %769 = vmatpush.msra.mxu0 0.0
    %770 = vmatpush.msra.mxu0 0.0
    %771 = vmatpush.msra.mxu0 0.0
    %772 = vmatpush.msra.mxu0 0.0
    %773 = vmatpush.msra.mxu0 0.0
    %774 = vmatpush.msra.mxu0 0.0
    %775 = vmatpush.msra.mxu0 %v666
    %776 = vmatpush.msra.mxu0 %v664
    %777 = vmatpush.msra.mxu0 %v662
    %778 = vmatpush.msra.mxu0 %v660
    %779 = vmatmul.f32.gmra.mxu0 %v675
    %v780 = vpop.f32.mrf.mxu0
    %v781 = vadd.f32 %v670, %v780
    %782 = vmatmul.f32.gmra.mxu0 %v678
    %v783 = vpop.f32.mrf.mxu0
    %v784 = vadd.f32 %v670, %v783
    %785 = vmatmul.f32.gmra.mxu0 %v681
    %v786 = vpop.f32.mrf.mxu0
    %v787 = vadd.f32 %v670, %v786
    %788 = vmatmul.f32.gmra.mxu0 %v684
    %v789 = vpop.f32.mrf.mxu0
    %v790 = vadd.f32 %v670, %v789
    %791 = vmatmul.f32.gmra.mxu0 %v687
    %v792 = vpop.f32.mrf.mxu0
    %v793 = vadd.f32 %v670, %v792
    %794 = vmatmul.f32.gmra.mxu0 %v690
    %v795 = vpop.f32.mrf.mxu0
    %v796 = vadd.f32 %v670, %v795
    %797 = vmatmul.f32.gmra.mxu0 %v693
    %v798 = vpop.f32.mrf.mxu0
    %v799 = vadd.f32 %v670, %v798
    %800 = vmatmul.f32.gmra.mxu0 %v696
    %v801 = vpop.f32.mrf.mxu0
    %v802 = vadd.f32 %v670, %v801
    %803 = vmatmul.f32.gmra.mxu0 %v699
    %v804 = vpop.f32.mrf.mxu0
    %v805 = vadd.f32 %v670, %v804
    %806 = vmatmul.f32.gmra.mxu0 %v702
    %v807 = vpop.f32.mrf.mxu0
    %v808 = vadd.f32 %v670, %v807
    %809 = vmatmul.f32.gmra.mxu0 %v705
    %v810 = vpop.f32.mrf.mxu0
    %v811 = vadd.f32 %v670, %v810
    %812 = vmatmul.f32.gmra.mxu0 %v708
    %v813 = vpop.f32.mrf.mxu0
    %v814 = vadd.f32 %v670, %v813
    %815 = vdwg.mxu0
    %816 = vst [vmem:[#allocation2] sm:$0xff] %v728
    %817 = vst [vmem:[#allocation2 + $0x8] sm:$0xff] %v781
    %818 = vst [vmem:[#allocation2 + $0x10] sm:$0xff] %v731
    %819 = vst [vmem:[#allocation2 + $0x18] sm:$0xff] %v784
    %820 = vst [vmem:[#allocation2 + $0x20] sm:$0xff] %v734
    %821 = vst [vmem:[#allocation2 + $0x28] sm:$0xff] %v787
    %822 = vst [vmem:[#allocation2 + $0x30] sm:$0xff] %v737
    %823 = vst [vmem:[#allocation2 + $0x38] sm:$0xff] %v790
    %824 = vst [vmem:[#allocation2 + $0x40] sm:$0xff] %v740
    %825 = vst [vmem:[#allocation2 + $0x48] sm:$0xff] %v793
    %826 = vst [vmem:[#allocation2 + $0x50] sm:$0xff] %v743
    %827 = vst [vmem:[#allocation2 + $0x58] sm:$0xff] %v796
    %828 = vst [vmem:[#allocation2 + $0x60] sm:$0xff] %v746
    %829 = vst [vmem:[#allocation2 + $0x68] sm:$0xff] %v799
    %830 = vst [vmem:[#allocation2 + $0x70] sm:$0xff] %v749
    %831 = vst [vmem:[#allocation2 + $0x78] sm:$0xff] %v802
    %832 = vst [vmem:[#allocation2 + $0x80] sm:$0xff] %v752
    %833 = vst [vmem:[#allocation2 + $0x88] sm:$0xff] %v805
    %834 = vst [vmem:[#allocation2 + $0x90] sm:$0xff] %v755
    %835 = vst [vmem:[#allocation2 + $0x98] sm:$0xff] %v808
    %836 = vst [vmem:[#allocation2 + $0xa0] sm:$0xff] %v758
    %837 = vst [vmem:[#allocation2 + $0xa8] sm:$0xff] %v811
    %838 = vst [vmem:[#allocation2 + $0xb0] sm:$0xff] %v761
    %839 = vst [vmem:[#allocation2 + $0xb8] sm:$0xff] %v814
    %v840 = vld [vmem:[%s6] sm:$0xff]
    %v841 = vld [vmem:[%s6 + $0x8] sm:$0xff]
    %v842 = vld [vmem:[%s6 + $0x10] sm:$0xff]
    %v843 = vld [vmem:[%s6 + $0x18] sm:$0xff]
    %v844 = vld [vmem:[%s6 + $0x20] sm:$0xff]
    %v845 = vld [vmem:[%s6 + $0x28] sm:$0xff]
    %v846 = vld [vmem:[%s6 + $0x30] sm:$0xff]
    %v847 = vld [vmem:[%s6 + $0x38] sm:$0xff]
    %v848 = vld [vmem:[%s6 + $0x40] sm:$0xff]
    %v849 = vld [vmem:[%s6 + $0x48] sm:$0xff]
    %v850 = vld [vmem:[%s6 + $0x50] sm:$0xff]
    %v851 = vld [vmem:[%s6 + $0x58] sm:$0xff]
    %v852 = vld [vmem:[%s6 + $0x60] sm:$0xff]
    %v853 = vld [vmem:[%s6 + $0x68] sm:$0xff]
    %v854 = vld [vmem:[%s6 + $0x70] sm:$0xff]
    %v855 = vld [vmem:[%s6 + $0x78] sm:$0xff]
    %v856 = vld [vmem:[#allocation2] sm:$0xff]
    %v857 = vld [vmem:[#allocation2 + $0x8] sm:$0xff]
    %vm858 = vcmask 523264
    %v860 = vsel %vm858, 0.0, 0
    %862 = vmatpush.msra.mxu0 0.0
    %863 = vmatpush.msra.mxu0 0.0
    %864 = vmatpush.msra.mxu0 0.0
    %865 = vmatpush.msra.mxu0 0.0
    %866 = vmatpush.msra.mxu0 0.0
    %867 = vmatpush.msra.mxu0 0.0
    %868 = vmatpush.msra.mxu0 0.0
    %869 = vmatpush.msra.mxu0 0.0
    %870 = vmatpush.msra.mxu0 %v854
    %871 = vmatpush.msra.mxu0 %v852
    %872 = vmatpush.msra.mxu0 %v850
    %873 = vmatpush.msra.mxu0 %v848
    %874 = vmatpush.msra.mxu0 %v846
    %875 = vmatpush.msra.mxu0 %v844
    %876 = vmatpush.msra.mxu0 %v842
    %877 = vmatpush.msra.mxu0 %v840
    %878 = vmatmul.f32.gmra.mxu0 %v860
    %v879 = vpop.f32.mrf.mxu0
    %v880 = vadd.f32 0.0, %v879
    %881 = vdwg.mxu0
    %882 = vmatpush.msra.mxu0 0.0
    %883 = vmatpush.msra.mxu0 0.0
    %884 = vmatpush.msra.mxu0 0.0
    %885 = vmatpush.msra.mxu0 0.0
    %886 = vmatpush.msra.mxu0 0.0
    %887 = vmatpush.msra.mxu0 0.0
    %888 = vmatpush.msra.mxu0 0.0
    %889 = vmatpush.msra.mxu0 0.0
    %890 = vmatpush.msra.mxu0 %v855
    %891 = vmatpush.msra.mxu0 %v853
    %892 = vmatpush.msra.mxu0 %v851
    %893 = vmatpush.msra.mxu0 %v849
    %894 = vmatpush.msra.mxu0 %v847
    %895 = vmatpush.msra.mxu0 %v845
    %896 = vmatpush.msra.mxu0 %v843
    %897 = vmatpush.msra.mxu0 %v841
    %898 = vmatmul.f32.gmra.mxu0 %v860
    %v899 = vpop.f32.mrf.mxu0
    %v900 = vadd.f32 0.0, %v899
    %901 = vdwg.mxu0
    %v902 = vadd.f32 %v856, %v880
    %v903 = vadd.f32 %v857, %v900
    %v904 = vxor.u32 %v902, 2147483648
    %v905 = vmul.f32 %v904, 1.442695
    %v906 = vpow.pop %v905
    %v907 = vadd.f32 %v906, 1.0
    %v908 = vrcp.pop %v907
    %v909 = vmul.f32 %v907, %v908
    %v910 = vsub.f32 1.0, %v909
    %v911 = vmul.f32 %v908, %v910
    %v912 = vadd.f32 %v908, %v911
    %vm913 = vweird.f32 %v907
    %vm914 = vweird.f32 %v908
    %vm915 = vmor %vm913, %vm914
    %v916 = vsel %vm915, %v908, %v912
    %v917 = vand.u32 2147483647, %v907
    %vm918 = vcmp.eq.f32.partialorder %v917, 8.507059e+37
    %v919 = vand.u32 %v907, 2147483648
    %v920 = vor.u32 1.1754944e-38, %v919
    %v921 = vsel %vm918, %v920, %v916
    %v922 = vmul.f32 1.0, %v921
    %v923 = vtanh.pop %v903
    %v924 = vxor.u32 %v903, 2147483648
    %v925 = vmul.f32 %v924, 1.442695
    %v926 = vpow.pop %v925
    %v927 = vadd.f32 %v926, 1.0
    %v928 = vrcp.pop %v927
    %v929 = vmul.f32 %v927, %v928
    %v930 = vsub.f32 1.0, %v929
    %v931 = vmul.f32 %v928, %v930
    %v932 = vadd.f32 %v928, %v931
    %vm933 = vweird.f32 %v927
    %vm934 = vweird.f32 %v928
    %vm935 = vmor %vm933, %vm934
    %v936 = vsel %vm935, %v928, %v932
    %v937 = vand.u32 2147483647, %v927
    %vm938 = vcmp.eq.f32.partialorder %v937, 8.507059e+37
    %v939 = vand.u32 %v927, 2147483648
    %v940 = vor.u32 1.1754944e-38, %v939
    %v941 = vsel %vm938, %v940, %v936
    %v942 = vmul.f32 1.0, %v941
    %v943 = vmul.f32 %v922, 0.0
    %v944 = vmul.f32 %v922, %v923
    %946 = vrot.lane.b32.xlu0 %v944, 64
    %v947 = vpop.permute.xlu0 %946
    %v949 = vadd.f32 %v943, %v947
    %v950 = vtanh.pop %v949
    %v951 = vmul.f32 %v942, %v950
    %s952 = scalar_lea.vmem [#allocation2], 16
    %v953 = vld [vmem:[%s952] sm:$0xff]
    %v954 = vld [vmem:[%s952 + $0x8] sm:$0xff]
    %956 = vrot.lane.b32.xlu0 %v951, 64
    %v957 = vpop.permute.xlu0 %956
    %v958 = vsel %vm858, %v957, 0
    %960 = vmatpush.msra.mxu0 0.0
    %961 = vmatpush.msra.mxu0 0.0
    %962 = vmatpush.msra.mxu0 0.0
    %963 = vmatpush.msra.mxu0 0.0
    %964 = vmatpush.msra.mxu0 0.0
    %965 = vmatpush.msra.mxu0 0.0
    %966 = vmatpush.msra.mxu0 0.0
    %967 = vmatpush.msra.mxu0 0.0
    %968 = vmatpush.msra.mxu0 %v854
    %969 = vmatpush.msra.mxu0 %v852
    %970 = vmatpush.msra.mxu0 %v850
    %971 = vmatpush.msra.mxu0 %v848
    %972 = vmatpush.msra.mxu0 %v846
    %973 = vmatpush.msra.mxu0 %v844
    %974 = vmatpush.msra.mxu0 %v842
    %975 = vmatpush.msra.mxu0 %v840
    %976 = vmatmul.f32.gmra.mxu0 %v958
    %v977 = vpop.f32.mrf.mxu0
    %v978 = vadd.f32 0.0, %v977
    %979 = vdwg.mxu0
    %980 = vmatpush.msra.mxu0 0.0
    %981 = vmatpush.msra.mxu0 0.0
    %982 = vmatpush.msra.mxu0 0.0
    %983 = vmatpush.msra.mxu0 0.0
    %984 = vmatpush.msra.mxu0 0.0
    %985 = vmatpush.msra.mxu0 0.0
    %986 = vmatpush.msra.mxu0 0.0
    %987 = vmatpush.msra.mxu0 0.0
    %988 = vmatpush.msra.mxu0 %v855
    %989 = vmatpush.msra.mxu0 %v853
    %990 = vmatpush.msra.mxu0 %v851
    %991 = vmatpush.msra.mxu0 %v849
    %992 = vmatpush.msra.mxu0 %v847
    %993 = vmatpush.msra.mxu0 %v845
    %994 = vmatpush.msra.mxu0 %v843
    %995 = vmatpush.msra.mxu0 %v841
    %996 = vmatmul.f32.gmra.mxu0 %v958
    %v997 = vpop.f32.mrf.mxu0
    %v998 = vadd.f32 0.0, %v997
    %999 = vdwg.mxu0
    %v1000 = vadd.f32 %v953, %v978
    %v1001 = vadd.f32 %v954, %v998
    %v1002 = vxor.u32 %v1000, 2147483648
    %v1003 = vmul.f32 %v1002, 1.442695
    %v1004 = vpow.pop %v1003
    %v1005 = vadd.f32 %v1004, 1.0
    %v1006 = vrcp.pop %v1005
    %v1007 = vmul.f32 %v1005, %v1006
    %v1008 = vsub.f32 1.0, %v1007
    %v1009 = vmul.f32 %v1006, %v1008
    %v1010 = vadd.f32 %v1006, %v1009
    %vm1011 = vweird.f32 %v1005
    %vm1012 = vweird.f32 %v1006
    %vm1013 = vmor %vm1011, %vm1012
    %v1014 = vsel %vm1013, %v1006, %v1010
    %v1015 = vand.u32 2147483647, %v1005
    %vm1016 = vcmp.eq.f32.partialorder %v1015, 8.507059e+37
    %v1017 = vand.u32 %v1005, 2147483648
    %v1018 = vor.u32 1.1754944e-38, %v1017
    %v1019 = vsel %vm1016, %v1018, %v1014
    %v1020 = vmul.f32 1.0, %v1019
    %v1021 = vtanh.pop %v1001
    %v1022 = vxor.u32 %v1001, 2147483648
    %v1023 = vmul.f32 %v1022, 1.442695
    %v1024 = vpow.pop %v1023
    %v1025 = vadd.f32 %v1024, 1.0
    %v1026 = vrcp.pop %v1025
    %v1027 = vmul.f32 %v1025, %v1026
    %v1028 = vsub.f32 1.0, %v1027
    %v1029 = vmul.f32 %v1026, %v1028
    %v1030 = vadd.f32 %v1026, %v1029
    %vm1031 = vweird.f32 %v1025
    %vm1032 = vweird.f32 %v1026
    %vm1033 = vmor %vm1031, %vm1032
    %v1034 = vsel %vm1033, %v1026, %v1030
    %v1035 = vand.u32 2147483647, %v1025
    %vm1036 = vcmp.eq.f32.partialorder %v1035, 8.507059e+37
    %v1037 = vand.u32 %v1025, 2147483648
    %v1038 = vor.u32 1.1754944e-38, %v1037
    %v1039 = vsel %vm1036, %v1038, %v1034
    %v1040 = vmul.f32 1.0, %v1039
    %v1041 = vmul.f32 %v1020, %v949
    %v1042 = vmul.f32 %v1020, %v1021
    %1044 = vrot.lane.b32.xlu0 %v1042, 64
    %v1045 = vpop.permute.xlu0 %1044
    %v1047 = vadd.f32 %v1041, %v1045
    %v1048 = vtanh.pop %v1047
    %v1049 = vmul.f32 %v1040, %v1048
    %s1050 = scalar_lea.vmem [#allocation2], 32
    %v1051 = vld [vmem:[%s1050] sm:$0xff]
    %v1052 = vld [vmem:[%s1050 + $0x8] sm:$0xff]
    %1054 = vrot.lane.b32.xlu0 %v1049, 64
    %v1055 = vpop.permute.xlu0 %1054
    %v1056 = vsel %vm858, %v1055, 0
    %1058 = vmatpush.msra.mxu0 0.0
    %1059 = vmatpush.msra.mxu0 0.0
    %1060 = vmatpush.msra.mxu0 0.0
    %1061 = vmatpush.msra.mxu0 0.0
    %1062 = vmatpush.msra.mxu0 0.0
    %1063 = vmatpush.msra.mxu0 0.0
    %1064 = vmatpush.msra.mxu0 0.0
    %1065 = vmatpush.msra.mxu0 0.0
    %1066 = vmatpush.msra.mxu0 %v854
    %1067 = vmatpush.msra.mxu0 %v852
    %1068 = vmatpush.msra.mxu0 %v850
    %1069 = vmatpush.msra.mxu0 %v848
    %1070 = vmatpush.msra.mxu0 %v846
    %1071 = vmatpush.msra.mxu0 %v844
    %1072 = vmatpush.msra.mxu0 %v842
    %1073 = vmatpush.msra.mxu0 %v840
    %1074 = vmatmul.f32.gmra.mxu0 %v1056
    %v1075 = vpop.f32.mrf.mxu0
    %v1076 = vadd.f32 0.0, %v1075
    %1077 = vdwg.mxu0
    %1078 = vmatpush.msra.mxu0 0.0
    %1079 = vmatpush.msra.mxu0 0.0
    %1080 = vmatpush.msra.mxu0 0.0
    %1081 = vmatpush.msra.mxu0 0.0
    %1082 = vmatpush.msra.mxu0 0.0
    %1083 = vmatpush.msra.mxu0 0.0
    %1084 = vmatpush.msra.mxu0 0.0
    %1085 = vmatpush.msra.mxu0 0.0
    %1086 = vmatpush.msra.mxu0 %v855
    %1087 = vmatpush.msra.mxu0 %v853
    %1088 = vmatpush.msra.mxu0 %v851
    %1089 = vmatpush.msra.mxu0 %v849
    %1090 = vmatpush.msra.mxu0 %v847
    %1091 = vmatpush.msra.mxu0 %v845
    %1092 = vmatpush.msra.mxu0 %v843
    %1093 = vmatpush.msra.mxu0 %v841
    %1094 = vmatmul.f32.gmra.mxu0 %v1056
    %v1095 = vpop.f32.mrf.mxu0
    %v1096 = vadd.f32 0.0, %v1095
    %1097 = vdwg.mxu0
    %v1098 = vadd.f32 %v1051, %v1076
    %v1099 = vadd.f32 %v1052, %v1096
    %v1100 = vxor.u32 %v1098, 2147483648
    %v1101 = vmul.f32 %v1100, 1.442695
    %v1102 = vpow.pop %v1101
    %v1103 = vadd.f32 %v1102, 1.0
    %v1104 = vrcp.pop %v1103
    %v1105 = vmul.f32 %v1103, %v1104
    %v1106 = vsub.f32 1.0, %v1105
    %v1107 = vmul.f32 %v1104, %v1106
    %v1108 = vadd.f32 %v1104, %v1107
    %vm1109 = vweird.f32 %v1103
    %vm1110 = vweird.f32 %v1104
    %vm1111 = vmor %vm1109, %vm1110
    %v1112 = vsel %vm1111, %v1104, %v1108
    %v1113 = vand.u32 2147483647, %v1103
    %vm1114 = vcmp.eq.f32.partialorder %v1113, 8.507059e+37
    %v1115 = vand.u32 %v1103, 2147483648
    %v1116 = vor.u32 1.1754944e-38, %v1115
    %v1117 = vsel %vm1114, %v1116, %v1112
    %v1118 = vmul.f32 1.0, %v1117
    %v1119 = vtanh.pop %v1099
    %v1120 = vxor.u32 %v1099, 2147483648
    %v1121 = vmul.f32 %v1120, 1.442695
    %v1122 = vpow.pop %v1121
    %v1123 = vadd.f32 %v1122, 1.0
    %v1124 = vrcp.pop %v1123
    %v1125 = vmul.f32 %v1123, %v1124
    %v1126 = vsub.f32 1.0, %v1125
    %v1127 = vmul.f32 %v1124, %v1126
    %v1128 = vadd.f32 %v1124, %v1127
    %vm1129 = vweird.f32 %v1123
    %vm1130 = vweird.f32 %v1124
    %vm1131 = vmor %vm1129, %vm1130
    %v1132 = vsel %vm1131, %v1124, %v1128
    %v1133 = vand.u32 2147483647, %v1123
    %vm1134 = vcmp.eq.f32.partialorder %v1133, 8.507059e+37
    %v1135 = vand.u32 %v1123, 2147483648
    %v1136 = vor.u32 1.1754944e-38, %v1135
    %v1137 = vsel %vm1134, %v1136, %v1132
    %v1138 = vmul.f32 1.0, %v1137
    %v1139 = vmul.f32 %v1118, %v1047
    %v1140 = vmul.f32 %v1118, %v1119
    %1142 = vrot.lane.b32.xlu0 %v1140, 64
    %v1143 = vpop.permute.xlu0 %1142
    %v1145 = vadd.f32 %v1139, %v1143
    %v1146 = vtanh.pop %v1145
    %v1147 = vmul.f32 %v1138, %v1146
    %s1148 = scalar_lea.vmem [#allocation2], 48
    %v1149 = vld [vmem:[%s1148] sm:$0xff]
    %v1150 = vld [vmem:[%s1148 + $0x8] sm:$0xff]
    %1152 = vrot.lane.b32.xlu0 %v1147, 64
    %v1153 = vpop.permute.xlu0 %1152
    %v1154 = vsel %vm858, %v1153, 0
    %1156 = vmatpush.msra.mxu0 0.0
    %1157 = vmatpush.msra.mxu0 0.0
    %1158 = vmatpush.msra.mxu0 0.0
    %1159 = vmatpush.msra.mxu0 0.0
    %1160 = vmatpush.msra.mxu0 0.0
    %1161 = vmatpush.msra.mxu0 0.0
    %1162 = vmatpush.msra.mxu0 0.0
    %1163 = vmatpush.msra.mxu0 0.0
    %1164 = vmatpush.msra.mxu0 %v854
    %1165 = vmatpush.msra.mxu0 %v852
    %1166 = vmatpush.msra.mxu0 %v850
    %1167 = vmatpush.msra.mxu0 %v848
    %1168 = vmatpush.msra.mxu0 %v846
    %1169 = vmatpush.msra.mxu0 %v844
    %1170 = vmatpush.msra.mxu0 %v842
    %1171 = vmatpush.msra.mxu0 %v840
    %1172 = vmatmul.f32.gmra.mxu0 %v1154
    %v1173 = vpop.f32.mrf.mxu0
    %v1174 = vadd.f32 0.0, %v1173
    %1175 = vdwg.mxu0
    %1176 = vmatpush.msra.mxu0 0.0
    %1177 = vmatpush.msra.mxu0 0.0
    %1178 = vmatpush.msra.mxu0 0.0
    %1179 = vmatpush.msra.mxu0 0.0
    %1180 = vmatpush.msra.mxu0 0.0
    %1181 = vmatpush.msra.mxu0 0.0
    %1182 = vmatpush.msra.mxu0 0.0
    %1183 = vmatpush.msra.mxu0 0.0
    %1184 = vmatpush.msra.mxu0 %v855
    %1185 = vmatpush.msra.mxu0 %v853
    %1186 = vmatpush.msra.mxu0 %v851
    %1187 = vmatpush.msra.mxu0 %v849
    %1188 = vmatpush.msra.mxu0 %v847
    %1189 = vmatpush.msra.mxu0 %v845
    %1190 = vmatpush.msra.mxu0 %v843
    %1191 = vmatpush.msra.mxu0 %v841
    %1192 = vmatmul.f32.gmra.mxu0 %v1154
    %v1193 = vpop.f32.mrf.mxu0
    %v1194 = vadd.f32 0.0, %v1193
    %1195 = vdwg.mxu0
    %v1196 = vadd.f32 %v1149, %v1174
    %v1197 = vadd.f32 %v1150, %v1194
    %v1198 = vxor.u32 %v1196, 2147483648
    %v1199 = vmul.f32 %v1198, 1.442695
    %v1200 = vpow.pop %v1199
    %v1201 = vadd.f32 %v1200, 1.0
    %v1202 = vrcp.pop %v1201
    %v1203 = vmul.f32 %v1201, %v1202
    %v1204 = vsub.f32 1.0, %v1203
    %v1205 = vmul.f32 %v1202, %v1204
    %v1206 = vadd.f32 %v1202, %v1205
    %vm1207 = vweird.f32 %v1201
    %vm1208 = vweird.f32 %v1202
    %vm1209 = vmor %vm1207, %vm1208
    %v1210 = vsel %vm1209, %v1202, %v1206
    %v1211 = vand.u32 2147483647, %v1201
    %vm1212 = vcmp.eq.f32.partialorder %v1211, 8.507059e+37
    %v1213 = vand.u32 %v1201, 2147483648
    %v1214 = vor.u32 1.1754944e-38, %v1213
    %v1215 = vsel %vm1212, %v1214, %v1210
    %v1216 = vmul.f32 1.0, %v1215
    %v1217 = vtanh.pop %v1197
    %v1218 = vxor.u32 %v1197, 2147483648
    %v1219 = vmul.f32 %v1218, 1.442695
    %v1220 = vpow.pop %v1219
    %v1221 = vadd.f32 %v1220, 1.0
    %v1222 = vrcp.pop %v1221
    %v1223 = vmul.f32 %v1221, %v1222
    %v1224 = vsub.f32 1.0, %v1223
    %v1225 = vmul.f32 %v1222, %v1224
    %v1226 = vadd.f32 %v1222, %v1225
    %vm1227 = vweird.f32 %v1221
    %vm1228 = vweird.f32 %v1222
    %vm1229 = vmor %vm1227, %vm1228
    %v1230 = vsel %vm1229, %v1222, %v1226
    %v1231 = vand.u32 2147483647, %v1221
    %vm1232 = vcmp.eq.f32.partialorder %v1231, 8.507059e+37
    %v1233 = vand.u32 %v1221, 2147483648
    %v1234 = vor.u32 1.1754944e-38, %v1233
    %v1235 = vsel %vm1232, %v1234, %v1230
    %v1236 = vmul.f32 1.0, %v1235
    %v1237 = vmul.f32 %v1216, %v1145
    %v1238 = vmul.f32 %v1216, %v1217
    %1240 = vrot.lane.b32.xlu0 %v1238, 64
    %v1241 = vpop.permute.xlu0 %1240
    %v1243 = vadd.f32 %v1237, %v1241
    %v1244 = vtanh.pop %v1243
    %v1245 = vmul.f32 %v1236, %v1244
    %s1246 = scalar_lea.vmem [#allocation2], 64
    %v1247 = vld [vmem:[%s1246] sm:$0xff]
    %v1248 = vld [vmem:[%s1246 + $0x8] sm:$0xff]
    %1250 = vrot.lane.b32.xlu0 %v1245, 64
    %v1251 = vpop.permute.xlu0 %1250
    %v1252 = vsel %vm858, %v1251, 0
    %1254 = vmatpush.msra.mxu0 0.0
    %1255 = vmatpush.msra.mxu0 0.0
    %1256 = vmatpush.msra.mxu0 0.0
    %1257 = vmatpush.msra.mxu0 0.0
    %1258 = vmatpush.msra.mxu0 0.0
    %1259 = vmatpush.msra.mxu0 0.0
    %1260 = vmatpush.msra.mxu0 0.0
    %1261 = vmatpush.msra.mxu0 0.0
    %1262 = vmatpush.msra.mxu0 %v854
    %1263 = vmatpush.msra.mxu0 %v852
    %1264 = vmatpush.msra.mxu0 %v850
    %1265 = vmatpush.msra.mxu0 %v848
    %1266 = vmatpush.msra.mxu0 %v846
    %1267 = vmatpush.msra.mxu0 %v844
    %1268 = vmatpush.msra.mxu0 %v842
    %1269 = vmatpush.msra.mxu0 %v840
    %1270 = vmatmul.f32.gmra.mxu0 %v1252
    %v1271 = vpop.f32.mrf.mxu0
    %v1272 = vadd.f32 0.0, %v1271
    %1273 = vdwg.mxu0
    %1274 = vmatpush.msra.mxu0 0.0
    %1275 = vmatpush.msra.mxu0 0.0
    %1276 = vmatpush.msra.mxu0 0.0
    %1277 = vmatpush.msra.mxu0 0.0
    %1278 = vmatpush.msra.mxu0 0.0
    %1279 = vmatpush.msra.mxu0 0.0
    %1280 = vmatpush.msra.mxu0 0.0
    %1281 = vmatpush.msra.mxu0 0.0
    %1282 = vmatpush.msra.mxu0 %v855
    %1283 = vmatpush.msra.mxu0 %v853
    %1284 = vmatpush.msra.mxu0 %v851
    %1285 = vmatpush.msra.mxu0 %v849
    %1286 = vmatpush.msra.mxu0 %v847
    %1287 = vmatpush.msra.mxu0 %v845
    %1288 = vmatpush.msra.mxu0 %v843
    %1289 = vmatpush.msra.mxu0 %v841
    %1290 = vmatmul.f32.gmra.mxu0 %v1252
    %v1291 = vpop.f32.mrf.mxu0
    %v1292 = vadd.f32 0.0, %v1291
    %1293 = vdwg.mxu0
    %v1294 = vadd.f32 %v1247, %v1272
    %v1295 = vadd.f32 %v1248, %v1292
    %v1296 = vxor.u32 %v1294, 2147483648
    %v1297 = vmul.f32 %v1296, 1.442695
    %v1298 = vpow.pop %v1297
    %v1299 = vadd.f32 %v1298, 1.0
    %v1300 = vrcp.pop %v1299
    %v1301 = vmul.f32 %v1299, %v1300
    %v1302 = vsub.f32 1.0, %v1301
    %v1303 = vmul.f32 %v1300, %v1302
    %v1304 = vadd.f32 %v1300, %v1303
    %vm1305 = vweird.f32 %v1299
    %vm1306 = vweird.f32 %v1300
    %vm1307 = vmor %vm1305, %vm1306
    %v1308 = vsel %vm1307, %v1300, %v1304
    %v1309 = vand.u32 2147483647, %v1299
    %vm1310 = vcmp.eq.f32.partialorder %v1309, 8.507059e+37
    %v1311 = vand.u32 %v1299, 2147483648
    %v1312 = vor.u32 1.1754944e-38, %v1311
    %v1313 = vsel %vm1310, %v1312, %v1308
    %v1314 = vmul.f32 1.0, %v1313
    %v1315 = vtanh.pop %v1295
    %v1316 = vxor.u32 %v1295, 2147483648
    %v1317 = vmul.f32 %v1316, 1.442695
    %v1318 = vpow.pop %v1317
    %v1319 = vadd.f32 %v1318, 1.0
    %v1320 = vrcp.pop %v1319
    %v1321 = vmul.f32 %v1319, %v1320
    %v1322 = vsub.f32 1.0, %v1321
    %v1323 = vmul.f32 %v1320, %v1322
    %v1324 = vadd.f32 %v1320, %v1323
    %vm1325 = vweird.f32 %v1319
    %vm1326 = vweird.f32 %v1320
    %vm1327 = vmor %vm1325, %vm1326
    %v1328 = vsel %vm1327, %v1320, %v1324
    %v1329 = vand.u32 2147483647, %v1319
    %vm1330 = vcmp.eq.f32.partialorder %v1329, 8.507059e+37
    %v1331 = vand.u32 %v1319, 2147483648
    %v1332 = vor.u32 1.1754944e-38, %v1331
    %v1333 = vsel %vm1330, %v1332, %v1328
    %v1334 = vmul.f32 1.0, %v1333
    %v1335 = vmul.f32 %v1314, %v1243
    %v1336 = vmul.f32 %v1314, %v1315
    %1338 = vrot.lane.b32.xlu0 %v1336, 64
    %v1339 = vpop.permute.xlu0 %1338
    %v1341 = vadd.f32 %v1335, %v1339
    %v1342 = vtanh.pop %v1341
    %v1343 = vmul.f32 %v1334, %v1342
    %s1344 = scalar_lea.vmem [#allocation2], 80
    %v1345 = vld [vmem:[%s1344] sm:$0xff]
    %v1346 = vld [vmem:[%s1344 + $0x8] sm:$0xff]
    %1348 = vrot.lane.b32.xlu0 %v1343, 64
    %v1349 = vpop.permute.xlu0 %1348
    %v1350 = vsel %vm858, %v1349, 0
    %1352 = vmatpush.msra.mxu0 0.0
    %1353 = vmatpush.msra.mxu0 0.0
    %1354 = vmatpush.msra.mxu0 0.0
    %1355 = vmatpush.msra.mxu0 0.0
    %1356 = vmatpush.msra.mxu0 0.0
    %1357 = vmatpush.msra.mxu0 0.0
    %1358 = vmatpush.msra.mxu0 0.0
    %1359 = vmatpush.msra.mxu0 0.0
    %1360 = vmatpush.msra.mxu0 %v854
    %1361 = vmatpush.msra.mxu0 %v852
    %1362 = vmatpush.msra.mxu0 %v850
    %1363 = vmatpush.msra.mxu0 %v848
    %1364 = vmatpush.msra.mxu0 %v846
    %1365 = vmatpush.msra.mxu0 %v844
    %1366 = vmatpush.msra.mxu0 %v842
    %1367 = vmatpush.msra.mxu0 %v840
    %1368 = vmatmul.f32.gmra.mxu0 %v1350
    %v1369 = vpop.f32.mrf.mxu0
    %v1370 = vadd.f32 0.0, %v1369
    %1371 = vdwg.mxu0
    %1372 = vmatpush.msra.mxu0 0.0
    %1373 = vmatpush.msra.mxu0 0.0
    %1374 = vmatpush.msra.mxu0 0.0
    %1375 = vmatpush.msra.mxu0 0.0
    %1376 = vmatpush.msra.mxu0 0.0
    %1377 = vmatpush.msra.mxu0 0.0
    %1378 = vmatpush.msra.mxu0 0.0
    %1379 = vmatpush.msra.mxu0 0.0
    %1380 = vmatpush.msra.mxu0 %v855
    %1381 = vmatpush.msra.mxu0 %v853
    %1382 = vmatpush.msra.mxu0 %v851
    %1383 = vmatpush.msra.mxu0 %v849
    %1384 = vmatpush.msra.mxu0 %v847
    %1385 = vmatpush.msra.mxu0 %v845
    %1386 = vmatpush.msra.mxu0 %v843
    %1387 = vmatpush.msra.mxu0 %v841
    %1388 = vmatmul.f32.gmra.mxu0 %v1350
    %v1389 = vpop.f32.mrf.mxu0
    %v1390 = vadd.f32 0.0, %v1389
    %1391 = vdwg.mxu0
    %v1392 = vadd.f32 %v1345, %v1370
    %v1393 = vadd.f32 %v1346, %v1390
    %v1394 = vxor.u32 %v1392, 2147483648
    %v1395 = vmul.f32 %v1394, 1.442695
    %v1396 = vpow.pop %v1395
    %v1397 = vadd.f32 %v1396, 1.0
    %v1398 = vrcp.pop %v1397
    %v1399 = vmul.f32 %v1397, %v1398
    %v1400 = vsub.f32 1.0, %v1399
    %v1401 = vmul.f32 %v1398, %v1400
    %v1402 = vadd.f32 %v1398, %v1401
    %vm1403 = vweird.f32 %v1397
    %vm1404 = vweird.f32 %v1398
    %vm1405 = vmor %vm1403, %vm1404
    %v1406 = vsel %vm1405, %v1398, %v1402
    %v1407 = vand.u32 2147483647, %v1397
    %vm1408 = vcmp.eq.f32.partialorder %v1407, 8.507059e+37
    %v1409 = vand.u32 %v1397, 2147483648
    %v1410 = vor.u32 1.1754944e-38, %v1409
    %v1411 = vsel %vm1408, %v1410, %v1406
    %v1412 = vmul.f32 1.0, %v1411
    %v1413 = vtanh.pop %v1393
    %v1414 = vxor.u32 %v1393, 2147483648
    %v1415 = vmul.f32 %v1414, 1.442695
    %v1416 = vpow.pop %v1415
    %v1417 = vadd.f32 %v1416, 1.0
    %v1418 = vrcp.pop %v1417
    %v1419 = vmul.f32 %v1417, %v1418
    %v1420 = vsub.f32 1.0, %v1419
    %v1421 = vmul.f32 %v1418, %v1420
    %v1422 = vadd.f32 %v1418, %v1421
    %vm1423 = vweird.f32 %v1417
    %vm1424 = vweird.f32 %v1418
    %vm1425 = vmor %vm1423, %vm1424
    %v1426 = vsel %vm1425, %v1418, %v1422
    %v1427 = vand.u32 2147483647, %v1417
    %vm1428 = vcmp.eq.f32.partialorder %v1427, 8.507059e+37
    %v1429 = vand.u32 %v1417, 2147483648
    %v1430 = vor.u32 1.1754944e-38, %v1429
    %v1431 = vsel %vm1428, %v1430, %v1426
    %v1432 = vmul.f32 1.0, %v1431
    %v1433 = vmul.f32 %v1412, %v1341
    %v1434 = vmul.f32 %v1412, %v1413
    %1436 = vrot.lane.b32.xlu0 %v1434, 64
    %v1437 = vpop.permute.xlu0 %1436
    %v1439 = vadd.f32 %v1433, %v1437
    %v1440 = vtanh.pop %v1439
    %v1441 = vmul.f32 %v1432, %v1440
    %s1442 = scalar_lea.vmem [#allocation2], 96
    %v1443 = vld [vmem:[%s1442] sm:$0xff]
    %v1444 = vld [vmem:[%s1442 + $0x8] sm:$0xff]
    %1446 = vrot.lane.b32.xlu0 %v1441, 64
    %v1447 = vpop.permute.xlu0 %1446
    %v1448 = vsel %vm858, %v1447, 0
    %1450 = vmatpush.msra.mxu0 0.0
    %1451 = vmatpush.msra.mxu0 0.0
    %1452 = vmatpush.msra.mxu0 0.0
    %1453 = vmatpush.msra.mxu0 0.0
    %1454 = vmatpush.msra.mxu0 0.0
    %1455 = vmatpush.msra.mxu0 0.0
    %1456 = vmatpush.msra.mxu0 0.0
    %1457 = vmatpush.msra.mxu0 0.0
    %1458 = vmatpush.msra.mxu0 %v854
    %1459 = vmatpush.msra.mxu0 %v852
    %1460 = vmatpush.msra.mxu0 %v850
    %1461 = vmatpush.msra.mxu0 %v848
    %1462 = vmatpush.msra.mxu0 %v846
    %1463 = vmatpush.msra.mxu0 %v844
    %1464 = vmatpush.msra.mxu0 %v842
    %1465 = vmatpush.msra.mxu0 %v840
    %1466 = vmatmul.f32.gmra.mxu0 %v1448
    %v1467 = vpop.f32.mrf.mxu0
    %v1468 = vadd.f32 0.0, %v1467
    %1469 = vdwg.mxu0
    %1470 = vmatpush.msra.mxu0 0.0
    %1471 = vmatpush.msra.mxu0 0.0
    %1472 = vmatpush.msra.mxu0 0.0
    %1473 = vmatpush.msra.mxu0 0.0
    %1474 = vmatpush.msra.mxu0 0.0
    %1475 = vmatpush.msra.mxu0 0.0
    %1476 = vmatpush.msra.mxu0 0.0
    %1477 = vmatpush.msra.mxu0 0.0
    %1478 = vmatpush.msra.mxu0 %v855
    %1479 = vmatpush.msra.mxu0 %v853
    %1480 = vmatpush.msra.mxu0 %v851
    %1481 = vmatpush.msra.mxu0 %v849
    %1482 = vmatpush.msra.mxu0 %v847
    %1483 = vmatpush.msra.mxu0 %v845
    %1484 = vmatpush.msra.mxu0 %v843
    %1485 = vmatpush.msra.mxu0 %v841
    %1486 = vmatmul.f32.gmra.mxu0 %v1448
    %v1487 = vpop.f32.mrf.mxu0
    %v1488 = vadd.f32 0.0, %v1487
    %1489 = vdwg.mxu0
    %v1490 = vadd.f32 %v1443, %v1468
    %v1491 = vadd.f32 %v1444, %v1488
    %v1492 = vxor.u32 %v1490, 2147483648
    %v1493 = vmul.f32 %v1492, 1.442695
    %v1494 = vpow.pop %v1493
    %v1495 = vadd.f32 %v1494, 1.0
    %v1496 = vrcp.pop %v1495
    %v1497 = vmul.f32 %v1495, %v1496
    %v1498 = vsub.f32 1.0, %v1497
    %v1499 = vmul.f32 %v1496, %v1498
    %v1500 = vadd.f32 %v1496, %v1499
    %vm1501 = vweird.f32 %v1495
    %vm1502 = vweird.f32 %v1496
    %vm1503 = vmor %vm1501, %vm1502
    %v1504 = vsel %vm1503, %v1496, %v1500
    %v1505 = vand.u32 2147483647, %v1495
    %vm1506 = vcmp.eq.f32.partialorder %v1505, 8.507059e+37
    %v1507 = vand.u32 %v1495, 2147483648
    %v1508 = vor.u32 1.1754944e-38, %v1507
    %v1509 = vsel %vm1506, %v1508, %v1504
    %v1510 = vmul.f32 1.0, %v1509
    %v1511 = vtanh.pop %v1491
    %v1512 = vxor.u32 %v1491, 2147483648
    %v1513 = vmul.f32 %v1512, 1.442695
    %v1514 = vpow.pop %v1513
    %v1515 = vadd.f32 %v1514, 1.0
    %v1516 = vrcp.pop %v1515
    %v1517 = vmul.f32 %v1515, %v1516
    %v1518 = vsub.f32 1.0, %v1517
    %v1519 = vmul.f32 %v1516, %v1518
    %v1520 = vadd.f32 %v1516, %v1519
    %vm1521 = vweird.f32 %v1515
    %vm1522 = vweird.f32 %v1516
    %vm1523 = vmor %vm1521, %vm1522
    %v1524 = vsel %vm1523, %v1516, %v1520
    %v1525 = vand.u32 2147483647, %v1515
    %vm1526 = vcmp.eq.f32.partialorder %v1525, 8.507059e+37
    %v1527 = vand.u32 %v1515, 2147483648
    %v1528 = vor.u32 1.1754944e-38, %v1527
    %v1529 = vsel %vm1526, %v1528, %v1524
    %v1530 = vmul.f32 1.0, %v1529
    %v1531 = vmul.f32 %v1510, %v1439
    %v1532 = vmul.f32 %v1510, %v1511
    %1534 = vrot.lane.b32.xlu0 %v1532, 64
    %v1535 = vpop.permute.xlu0 %1534
    %v1537 = vadd.f32 %v1531, %v1535
    %v1538 = vtanh.pop %v1537
    %v1539 = vmul.f32 %v1530, %v1538
    %s1540 = scalar_lea.vmem [#allocation2], 112
    %v1541 = vld [vmem:[%s1540] sm:$0xff]
    %v1542 = vld [vmem:[%s1540 + $0x8] sm:$0xff]
    %1544 = vrot.lane.b32.xlu0 %v1539, 64
    %v1545 = vpop.permute.xlu0 %1544
    %v1546 = vsel %vm858, %v1545, 0
    %1548 = vmatpush.msra.mxu0 0.0
    %1549 = vmatpush.msra.mxu0 0.0
    %1550 = vmatpush.msra.mxu0 0.0
    %1551 = vmatpush.msra.mxu0 0.0
    %1552 = vmatpush.msra.mxu0 0.0
    %1553 = vmatpush.msra.mxu0 0.0
    %1554 = vmatpush.msra.mxu0 0.0
    %1555 = vmatpush.msra.mxu0 0.0
    %1556 = vmatpush.msra.mxu0 %v854
    %1557 = vmatpush.msra.mxu0 %v852
    %1558 = vmatpush.msra.mxu0 %v850
    %1559 = vmatpush.msra.mxu0 %v848
    %1560 = vmatpush.msra.mxu0 %v846
    %1561 = vmatpush.msra.mxu0 %v844
    %1562 = vmatpush.msra.mxu0 %v842
    %1563 = vmatpush.msra.mxu0 %v840
    %1564 = vmatmul.f32.gmra.mxu0 %v1546
    %v1565 = vpop.f32.mrf.mxu0
    %v1566 = vadd.f32 0.0, %v1565
    %1567 = vdwg.mxu0
    %1568 = vmatpush.msra.mxu0 0.0
    %1569 = vmatpush.msra.mxu0 0.0
    %1570 = vmatpush.msra.mxu0 0.0
    %1571 = vmatpush.msra.mxu0 0.0
    %1572 = vmatpush.msra.mxu0 0.0
    %1573 = vmatpush.msra.mxu0 0.0
    %1574 = vmatpush.msra.mxu0 0.0
    %1575 = vmatpush.msra.mxu0 0.0
    %1576 = vmatpush.msra.mxu0 %v855
    %1577 = vmatpush.msra.mxu0 %v853
    %1578 = vmatpush.msra.mxu0 %v851
    %1579 = vmatpush.msra.mxu0 %v849
    %1580 = vmatpush.msra.mxu0 %v847
    %1581 = vmatpush.msra.mxu0 %v845
    %1582 = vmatpush.msra.mxu0 %v843
    %1583 = vmatpush.msra.mxu0 %v841
    %1584 = vmatmul.f32.gmra.mxu0 %v1546
    %v1585 = vpop.f32.mrf.mxu0
    %v1586 = vadd.f32 0.0, %v1585
    %1587 = vdwg.mxu0
    %v1588 = vadd.f32 %v1541, %v1566
    %v1589 = vadd.f32 %v1542, %v1586
    %v1590 = vxor.u32 %v1588, 2147483648
    %v1591 = vmul.f32 %v1590, 1.442695
    %v1592 = vpow.pop %v1591
    %v1593 = vadd.f32 %v1592, 1.0
    %v1594 = vrcp.pop %v1593
    %v1595 = vmul.f32 %v1593, %v1594
    %v1596 = vsub.f32 1.0, %v1595
    %v1597 = vmul.f32 %v1594, %v1596
    %v1598 = vadd.f32 %v1594, %v1597
    %vm1599 = vweird.f32 %v1593
    %vm1600 = vweird.f32 %v1594
    %vm1601 = vmor %vm1599, %vm1600
    %v1602 = vsel %vm1601, %v1594, %v1598
    %v1603 = vand.u32 2147483647, %v1593
    %vm1604 = vcmp.eq.f32.partialorder %v1603, 8.507059e+37
    %v1605 = vand.u32 %v1593, 2147483648
    %v1606 = vor.u32 1.1754944e-38, %v1605
    %v1607 = vsel %vm1604, %v1606, %v1602
    %v1608 = vmul.f32 1.0, %v1607
    %v1609 = vtanh.pop %v1589
    %v1610 = vxor.u32 %v1589, 2147483648
    %v1611 = vmul.f32 %v1610, 1.442695
    %v1612 = vpow.pop %v1611
    %v1613 = vadd.f32 %v1612, 1.0
    %v1614 = vrcp.pop %v1613
    %v1615 = vmul.f32 %v1613, %v1614
    %v1616 = vsub.f32 1.0, %v1615
    %v1617 = vmul.f32 %v1614, %v1616
    %v1618 = vadd.f32 %v1614, %v1617
    %vm1619 = vweird.f32 %v1613
    %vm1620 = vweird.f32 %v1614
    %vm1621 = vmor %vm1619, %vm1620
    %v1622 = vsel %vm1621, %v1614, %v1618
    %v1623 = vand.u32 2147483647, %v1613
    %vm1624 = vcmp.eq.f32.partialorder %v1623, 8.507059e+37
    %v1625 = vand.u32 %v1613, 2147483648
    %v1626 = vor.u32 1.1754944e-38, %v1625
    %v1627 = vsel %vm1624, %v1626, %v1622
    %v1628 = vmul.f32 1.0, %v1627
    %v1629 = vmul.f32 %v1608, %v1537
    %v1630 = vmul.f32 %v1608, %v1609
    %1632 = vrot.lane.b32.xlu0 %v1630, 64
    %v1633 = vpop.permute.xlu0 %1632
    %v1635 = vadd.f32 %v1629, %v1633
    %v1636 = vtanh.pop %v1635
    %v1637 = vmul.f32 %v1628, %v1636
    %s1638 = scalar_lea.vmem [#allocation2], 128
    %v1639 = vld [vmem:[%s1638] sm:$0xff]
    %v1640 = vld [vmem:[%s1638 + $0x8] sm:$0xff]
    %1642 = vrot.lane.b32.xlu0 %v1637, 64
    %v1643 = vpop.permute.xlu0 %1642
    %v1644 = vsel %vm858, %v1643, 0
    %1646 = vmatpush.msra.mxu0 0.0
    %1647 = vmatpush.msra.mxu0 0.0
    %1648 = vmatpush.msra.mxu0 0.0
    %1649 = vmatpush.msra.mxu0 0.0
    %1650 = vmatpush.msra.mxu0 0.0
    %1651 = vmatpush.msra.mxu0 0.0
    %1652 = vmatpush.msra.mxu0 0.0
    %1653 = vmatpush.msra.mxu0 0.0
    %1654 = vmatpush.msra.mxu0 %v854
    %1655 = vmatpush.msra.mxu0 %v852
    %1656 = vmatpush.msra.mxu0 %v850
    %1657 = vmatpush.msra.mxu0 %v848
    %1658 = vmatpush.msra.mxu0 %v846
    %1659 = vmatpush.msra.mxu0 %v844
    %1660 = vmatpush.msra.mxu0 %v842
    %1661 = vmatpush.msra.mxu0 %v840
    %1662 = vmatmul.f32.gmra.mxu0 %v1644
    %v1663 = vpop.f32.mrf.mxu0
    %v1664 = vadd.f32 0.0, %v1663
    %1665 = vdwg.mxu0
    %1666 = vmatpush.msra.mxu0 0.0
    %1667 = vmatpush.msra.mxu0 0.0
    %1668 = vmatpush.msra.mxu0 0.0
    %1669 = vmatpush.msra.mxu0 0.0
    %1670 = vmatpush.msra.mxu0 0.0
    %1671 = vmatpush.msra.mxu0 0.0
    %1672 = vmatpush.msra.mxu0 0.0
    %1673 = vmatpush.msra.mxu0 0.0
    %1674 = vmatpush.msra.mxu0 %v855
    %1675 = vmatpush.msra.mxu0 %v853
    %1676 = vmatpush.msra.mxu0 %v851
    %1677 = vmatpush.msra.mxu0 %v849
    %1678 = vmatpush.msra.mxu0 %v847
    %1679 = vmatpush.msra.mxu0 %v845
    %1680 = vmatpush.msra.mxu0 %v843
    %1681 = vmatpush.msra.mxu0 %v841
    %1682 = vmatmul.f32.gmra.mxu0 %v1644
    %v1683 = vpop.f32.mrf.mxu0
    %v1684 = vadd.f32 0.0, %v1683
    %1685 = vdwg.mxu0
    %v1686 = vadd.f32 %v1639, %v1664
    %v1687 = vadd.f32 %v1640, %v1684
    %v1688 = vxor.u32 %v1686, 2147483648
    %v1689 = vmul.f32 %v1688, 1.442695
    %v1690 = vpow.pop %v1689
    %v1691 = vadd.f32 %v1690, 1.0
    %v1692 = vrcp.pop %v1691
    %v1693 = vmul.f32 %v1691, %v1692
    %v1694 = vsub.f32 1.0, %v1693
    %v1695 = vmul.f32 %v1692, %v1694
    %v1696 = vadd.f32 %v1692, %v1695
    %vm1697 = vweird.f32 %v1691
    %vm1698 = vweird.f32 %v1692
    %vm1699 = vmor %vm1697, %vm1698
    %v1700 = vsel %vm1699, %v1692, %v1696
    %v1701 = vand.u32 2147483647, %v1691
    %vm1702 = vcmp.eq.f32.partialorder %v1701, 8.507059e+37
    %v1703 = vand.u32 %v1691, 2147483648
    %v1704 = vor.u32 1.1754944e-38, %v1703
    %v1705 = vsel %vm1702, %v1704, %v1700
    %v1706 = vmul.f32 1.0, %v1705
    %v1707 = vtanh.pop %v1687
    %v1708 = vxor.u32 %v1687, 2147483648
    %v1709 = vmul.f32 %v1708, 1.442695
    %v1710 = vpow.pop %v1709
    %v1711 = vadd.f32 %v1710, 1.0
    %v1712 = vrcp.pop %v1711
    %v1713 = vmul.f32 %v1711, %v1712
    %v1714 = vsub.f32 1.0, %v1713
    %v1715 = vmul.f32 %v1712, %v1714
    %v1716 = vadd.f32 %v1712, %v1715
    %vm1717 = vweird.f32 %v1711
    %vm1718 = vweird.f32 %v1712
    %vm1719 = vmor %vm1717, %vm1718
    %v1720 = vsel %vm1719, %v1712, %v1716
    %v1721 = vand.u32 2147483647, %v1711
    %vm1722 = vcmp.eq.f32.partialorder %v1721, 8.507059e+37
    %v1723 = vand.u32 %v1711, 2147483648
    %v1724 = vor.u32 1.1754944e-38, %v1723
    %v1725 = vsel %vm1722, %v1724, %v1720
    %v1726 = vmul.f32 1.0, %v1725
    %v1727 = vmul.f32 %v1706, %v1635
    %v1728 = vmul.f32 %v1706, %v1707
    %1730 = vrot.lane.b32.xlu0 %v1728, 64
    %v1731 = vpop.permute.xlu0 %1730
    %v1733 = vadd.f32 %v1727, %v1731
    %v1734 = vtanh.pop %v1733
    %v1735 = vmul.f32 %v1726, %v1734
    %s1736 = scalar_lea.vmem [#allocation2], 144
    %v1737 = vld [vmem:[%s1736] sm:$0xff]
    %v1738 = vld [vmem:[%s1736 + $0x8] sm:$0xff]
    %1740 = vrot.lane.b32.xlu0 %v1735, 64
    %v1741 = vpop.permute.xlu0 %1740
    %v1742 = vsel %vm858, %v1741, 0
    %1744 = vmatpush.msra.mxu0 0.0
    %1745 = vmatpush.msra.mxu0 0.0
    %1746 = vmatpush.msra.mxu0 0.0
    %1747 = vmatpush.msra.mxu0 0.0
    %1748 = vmatpush.msra.mxu0 0.0
    %1749 = vmatpush.msra.mxu0 0.0
    %1750 = vmatpush.msra.mxu0 0.0
    %1751 = vmatpush.msra.mxu0 0.0
    %1752 = vmatpush.msra.mxu0 %v854
    %1753 = vmatpush.msra.mxu0 %v852
    %1754 = vmatpush.msra.mxu0 %v850
    %1755 = vmatpush.msra.mxu0 %v848
    %1756 = vmatpush.msra.mxu0 %v846
    %1757 = vmatpush.msra.mxu0 %v844
    %1758 = vmatpush.msra.mxu0 %v842
    %1759 = vmatpush.msra.mxu0 %v840
    %1760 = vmatmul.f32.gmra.mxu0 %v1742
    %v1761 = vpop.f32.mrf.mxu0
    %v1762 = vadd.f32 0.0, %v1761
    %1763 = vdwg.mxu0
    %1764 = vmatpush.msra.mxu0 0.0
    %1765 = vmatpush.msra.mxu0 0.0
    %1766 = vmatpush.msra.mxu0 0.0
    %1767 = vmatpush.msra.mxu0 0.0
    %1768 = vmatpush.msra.mxu0 0.0
    %1769 = vmatpush.msra.mxu0 0.0
    %1770 = vmatpush.msra.mxu0 0.0
    %1771 = vmatpush.msra.mxu0 0.0
    %1772 = vmatpush.msra.mxu0 %v855
    %1773 = vmatpush.msra.mxu0 %v853
    %1774 = vmatpush.msra.mxu0 %v851
    %1775 = vmatpush.msra.mxu0 %v849
    %1776 = vmatpush.msra.mxu0 %v847
    %1777 = vmatpush.msra.mxu0 %v845
    %1778 = vmatpush.msra.mxu0 %v843
    %1779 = vmatpush.msra.mxu0 %v841
    %1780 = vmatmul.f32.gmra.mxu0 %v1742
    %v1781 = vpop.f32.mrf.mxu0
    %v1782 = vadd.f32 0.0, %v1781
    %1783 = vdwg.mxu0
    %v1784 = vadd.f32 %v1737, %v1762
    %v1785 = vadd.f32 %v1738, %v1782
    %v1786 = vxor.u32 %v1784, 2147483648
    %v1787 = vmul.f32 %v1786, 1.442695
    %v1788 = vpow.pop %v1787
    %v1789 = vadd.f32 %v1788, 1.0
    %v1790 = vrcp.pop %v1789
    %v1791 = vmul.f32 %v1789, %v1790
    %v1792 = vsub.f32 1.0, %v1791
    %v1793 = vmul.f32 %v1790, %v1792
    %v1794 = vadd.f32 %v1790, %v1793
    %vm1795 = vweird.f32 %v1789
    %vm1796 = vweird.f32 %v1790
    %vm1797 = vmor %vm1795, %vm1796
    %v1798 = vsel %vm1797, %v1790, %v1794
    %v1799 = vand.u32 2147483647, %v1789
    %vm1800 = vcmp.eq.f32.partialorder %v1799, 8.507059e+37
    %v1801 = vand.u32 %v1789, 2147483648
    %v1802 = vor.u32 1.1754944e-38, %v1801
    %v1803 = vsel %vm1800, %v1802, %v1798
    %v1804 = vmul.f32 1.0, %v1803
    %v1805 = vtanh.pop %v1785
    %v1806 = vxor.u32 %v1785, 2147483648
    %v1807 = vmul.f32 %v1806, 1.442695
    %v1808 = vpow.pop %v1807
    %v1809 = vadd.f32 %v1808, 1.0
    %v1810 = vrcp.pop %v1809
    %v1811 = vmul.f32 %v1809, %v1810
    %v1812 = vsub.f32 1.0, %v1811
    %v1813 = vmul.f32 %v1810, %v1812
    %v1814 = vadd.f32 %v1810, %v1813
    %vm1815 = vweird.f32 %v1809
    %vm1816 = vweird.f32 %v1810
    %vm1817 = vmor %vm1815, %vm1816
    %v1818 = vsel %vm1817, %v1810, %v1814
    %v1819 = vand.u32 2147483647, %v1809
    %vm1820 = vcmp.eq.f32.partialorder %v1819, 8.507059e+37
    %v1821 = vand.u32 %v1809, 2147483648
    %v1822 = vor.u32 1.1754944e-38, %v1821
    %v1823 = vsel %vm1820, %v1822, %v1818
    %v1824 = vmul.f32 1.0, %v1823
    %v1825 = vmul.f32 %v1804, %v1733
    %v1826 = vmul.f32 %v1804, %v1805
    %1828 = vrot.lane.b32.xlu0 %v1826, 64
    %v1829 = vpop.permute.xlu0 %1828
    %v1831 = vadd.f32 %v1825, %v1829
    %v1832 = vtanh.pop %v1831
    %v1833 = vmul.f32 %v1824, %v1832
    %s1834 = scalar_lea.vmem [#allocation2], 160
    %v1835 = vld [vmem:[%s1834] sm:$0xff]
    %v1836 = vld [vmem:[%s1834 + $0x8] sm:$0xff]
    %1838 = vrot.lane.b32.xlu0 %v1833, 64
    %v1839 = vpop.permute.xlu0 %1838
    %v1840 = vsel %vm858, %v1839, 0
    %1842 = vmatpush.msra.mxu0 0.0
    %1843 = vmatpush.msra.mxu0 0.0
    %1844 = vmatpush.msra.mxu0 0.0
    %1845 = vmatpush.msra.mxu0 0.0
    %1846 = vmatpush.msra.mxu0 0.0
    %1847 = vmatpush.msra.mxu0 0.0
    %1848 = vmatpush.msra.mxu0 0.0
    %1849 = vmatpush.msra.mxu0 0.0
    %1850 = vmatpush.msra.mxu0 %v854
    %1851 = vmatpush.msra.mxu0 %v852
    %1852 = vmatpush.msra.mxu0 %v850
    %1853 = vmatpush.msra.mxu0 %v848
    %1854 = vmatpush.msra.mxu0 %v846
    %1855 = vmatpush.msra.mxu0 %v844
    %1856 = vmatpush.msra.mxu0 %v842
    %1857 = vmatpush.msra.mxu0 %v840
    %1858 = vmatmul.f32.gmra.mxu0 %v1840
    %v1859 = vpop.f32.mrf.mxu0
    %v1860 = vadd.f32 0.0, %v1859
    %1861 = vdwg.mxu0
    %1862 = vmatpush.msra.mxu0 0.0
    %1863 = vmatpush.msra.mxu0 0.0
    %1864 = vmatpush.msra.mxu0 0.0
    %1865 = vmatpush.msra.mxu0 0.0
    %1866 = vmatpush.msra.mxu0 0.0
    %1867 = vmatpush.msra.mxu0 0.0
    %1868 = vmatpush.msra.mxu0 0.0
    %1869 = vmatpush.msra.mxu0 0.0
    %1870 = vmatpush.msra.mxu0 %v855
    %1871 = vmatpush.msra.mxu0 %v853
    %1872 = vmatpush.msra.mxu0 %v851
    %1873 = vmatpush.msra.mxu0 %v849
    %1874 = vmatpush.msra.mxu0 %v847
    %1875 = vmatpush.msra.mxu0 %v845
    %1876 = vmatpush.msra.mxu0 %v843
    %1877 = vmatpush.msra.mxu0 %v841
    %1878 = vmatmul.f32.gmra.mxu0 %v1840
    %v1879 = vpop.f32.mrf.mxu0
    %v1880 = vadd.f32 0.0, %v1879
    %1881 = vdwg.mxu0
    %v1882 = vadd.f32 %v1835, %v1860
    %v1883 = vadd.f32 %v1836, %v1880
    %v1884 = vxor.u32 %v1882, 2147483648
    %v1885 = vmul.f32 %v1884, 1.442695
    %v1886 = vpow.pop %v1885
    %v1887 = vadd.f32 %v1886, 1.0
    %v1888 = vrcp.pop %v1887
    %v1889 = vmul.f32 %v1887, %v1888
    %v1890 = vsub.f32 1.0, %v1889
    %v1891 = vmul.f32 %v1888, %v1890
    %v1892 = vadd.f32 %v1888, %v1891
    %vm1893 = vweird.f32 %v1887
    %vm1894 = vweird.f32 %v1888
    %vm1895 = vmor %vm1893, %vm1894
    %v1896 = vsel %vm1895, %v1888, %v1892
    %v1897 = vand.u32 2147483647, %v1887
    %vm1898 = vcmp.eq.f32.partialorder %v1897, 8.507059e+37
    %v1899 = vand.u32 %v1887, 2147483648
    %v1900 = vor.u32 1.1754944e-38, %v1899
    %v1901 = vsel %vm1898, %v1900, %v1896
    %v1902 = vmul.f32 1.0, %v1901
    %v1903 = vtanh.pop %v1883
    %v1904 = vxor.u32 %v1883, 2147483648
    %v1905 = vmul.f32 %v1904, 1.442695
    %v1906 = vpow.pop %v1905
    %v1907 = vadd.f32 %v1906, 1.0
    %v1908 = vrcp.pop %v1907
    %v1909 = vmul.f32 %v1907, %v1908
    %v1910 = vsub.f32 1.0, %v1909
    %v1911 = vmul.f32 %v1908, %v1910
    %v1912 = vadd.f32 %v1908, %v1911
    %vm1913 = vweird.f32 %v1907
    %vm1914 = vweird.f32 %v1908
    %vm1915 = vmor %vm1913, %vm1914
    %v1916 = vsel %vm1915, %v1908, %v1912
    %v1917 = vand.u32 2147483647, %v1907
    %vm1918 = vcmp.eq.f32.partialorder %v1917, 8.507059e+37
    %v1919 = vand.u32 %v1907, 2147483648
    %v1920 = vor.u32 1.1754944e-38, %v1919
    %v1921 = vsel %vm1918, %v1920, %v1916
    %v1922 = vmul.f32 1.0, %v1921
    %v1923 = vmul.f32 %v1902, %v1831
    %v1924 = vmul.f32 %v1902, %v1903
    %1926 = vrot.lane.b32.xlu0 %v1924, 64
    %v1927 = vpop.permute.xlu0 %1926
    %v1929 = vadd.f32 %v1923, %v1927
    %v1930 = vtanh.pop %v1929
    %v1931 = vmul.f32 %v1922, %v1930
    %s1932 = scalar_lea.vmem [#allocation2], 176
    %v1933 = vld [vmem:[%s1932] sm:$0xff]
    %v1934 = vld [vmem:[%s1932 + $0x8] sm:$0xff]
    %1936 = vrot.lane.b32.xlu0 %v1931, 64
    %v1937 = vpop.permute.xlu0 %1936
    %v1938 = vsel %vm858, %v1937, 0
    %1940 = vmatpush.msra.mxu0 0.0
    %1941 = vmatpush.msra.mxu0 0.0
    %1942 = vmatpush.msra.mxu0 0.0
    %1943 = vmatpush.msra.mxu0 0.0
    %1944 = vmatpush.msra.mxu0 0.0
    %1945 = vmatpush.msra.mxu0 0.0
    %1946 = vmatpush.msra.mxu0 0.0
    %1947 = vmatpush.msra.mxu0 0.0
    %1948 = vmatpush.msra.mxu0 %v854
    %1949 = vmatpush.msra.mxu0 %v852
    %1950 = vmatpush.msra.mxu0 %v850
    %1951 = vmatpush.msra.mxu0 %v848
    %1952 = vmatpush.msra.mxu0 %v846
    %1953 = vmatpush.msra.mxu0 %v844
    %1954 = vmatpush.msra.mxu0 %v842
    %1955 = vmatpush.msra.mxu0 %v840
    %1956 = vmatmul.f32.gmra.mxu0 %v1938
    %v1957 = vpop.f32.mrf.mxu0
    %v1958 = vadd.f32 0.0, %v1957
    %1959 = vdwg.mxu0
    %1960 = vmatpush.msra.mxu0 0.0
    %1961 = vmatpush.msra.mxu0 0.0
    %1962 = vmatpush.msra.mxu0 0.0
    %1963 = vmatpush.msra.mxu0 0.0
    %1964 = vmatpush.msra.mxu0 0.0
    %1965 = vmatpush.msra.mxu0 0.0
    %1966 = vmatpush.msra.mxu0 0.0
    %1967 = vmatpush.msra.mxu0 0.0
    %1968 = vmatpush.msra.mxu0 %v855
    %1969 = vmatpush.msra.mxu0 %v853
    %1970 = vmatpush.msra.mxu0 %v851
    %1971 = vmatpush.msra.mxu0 %v849
    %1972 = vmatpush.msra.mxu0 %v847
    %1973 = vmatpush.msra.mxu0 %v845
    %1974 = vmatpush.msra.mxu0 %v843
    %1975 = vmatpush.msra.mxu0 %v841
    %1976 = vmatmul.f32.gmra.mxu0 %v1938
    %v1977 = vpop.f32.mrf.mxu0
    %v1978 = vadd.f32 0.0, %v1977
    %1979 = vdwg.mxu0
    %v1980 = vadd.f32 %v1933, %v1958
    %v1981 = vadd.f32 %v1934, %v1978
    %v1982 = vxor.u32 %v1980, 2147483648
    %v1983 = vmul.f32 %v1982, 1.442695
    %v1984 = vpow.pop %v1983
    %v1985 = vadd.f32 %v1984, 1.0
    %v1986 = vrcp.pop %v1985
    %v1987 = vmul.f32 %v1985, %v1986
    %v1988 = vsub.f32 1.0, %v1987
    %v1989 = vmul.f32 %v1986, %v1988
    %v1990 = vadd.f32 %v1986, %v1989
    %vm1991 = vweird.f32 %v1985
    %vm1992 = vweird.f32 %v1986
    %vm1993 = vmor %vm1991, %vm1992
    %v1994 = vsel %vm1993, %v1986, %v1990
    %v1995 = vand.u32 2147483647, %v1985
    %vm1996 = vcmp.eq.f32.partialorder %v1995, 8.507059e+37
    %v1997 = vand.u32 %v1985, 2147483648
    %v1998 = vor.u32 1.1754944e-38, %v1997
    %v1999 = vsel %vm1996, %v1998, %v1994
    %v2000 = vmul.f32 1.0, %v1999
    %v2001 = vtanh.pop %v1981
    %v2002 = vxor.u32 %v1981, 2147483648
    %v2003 = vmul.f32 %v2002, 1.442695
    %v2004 = vpow.pop %v2003
    %v2005 = vadd.f32 %v2004, 1.0
    %v2006 = vrcp.pop %v2005
    %v2007 = vmul.f32 %v2005, %v2006
    %v2008 = vsub.f32 1.0, %v2007
    %v2009 = vmul.f32 %v2006, %v2008
    %v2010 = vadd.f32 %v2006, %v2009
    %vm2011 = vweird.f32 %v2005
    %vm2012 = vweird.f32 %v2006
    %vm2013 = vmor %vm2011, %vm2012
    %v2014 = vsel %vm2013, %v2006, %v2010
    %v2015 = vand.u32 2147483647, %v2005
    %vm2016 = vcmp.eq.f32.partialorder %v2015, 8.507059e+37
    %v2017 = vand.u32 %v2005, 2147483648
    %v2018 = vor.u32 1.1754944e-38, %v2017
    %v2019 = vsel %vm2016, %v2018, %v2014
    %v2020 = vmul.f32 1.0, %v2019
    %v2021 = vmul.f32 %v2000, %v1929
    %v2022 = vmul.f32 %v2000, %v2001
    %2024 = vrot.lane.b32.xlu0 %v2022, 64
    %v2025 = vpop.permute.xlu0 %2024
    %v2027 = vadd.f32 %v2021, %v2025
    %v2028 = vtanh.pop %v2027
    %v2029 = vmul.f32 %v2020, %v2028
    %v2030 = vld [vmem:[%s8] sm:$0xff]
    %v2031 = vld [vmem:[%s8 + $0x8] sm:$0xff]
    %v2032 = vld [vmem:[%s8 + $0x10] sm:$0xff]
    %v2033 = vld [vmem:[%s8 + $0x18] sm:$0xff]
    %v2034 = vld [vmem:[%s8 + $0x20] sm:$0xff]
    %v2035 = vld [vmem:[%s8 + $0x28] sm:$0xff]
    %v2036 = vld [vmem:[%s8 + $0x30] sm:$0xff]
    %v2037 = vld [vmem:[%s8 + $0x38] sm:$0xff]
    %v2038 = vld [vmem:[%s9] sm:$0x1]
    %v2040 = vperm.slane %v2038, 0
    %2043 = vrot.lane.b32.xlu0 %v2029, 64
    %v2044 = vpop.permute.xlu0 %2043
    %v2045 = vsel %vm858, %v2044, 0
    %2047 = vmatpush.msra.mxu0 0.0
    %2048 = vmatpush.msra.mxu0 0.0
    %2049 = vmatpush.msra.mxu0 0.0
    %2050 = vmatpush.msra.mxu0 0.0
    %2051 = vmatpush.msra.mxu0 0.0
    %2052 = vmatpush.msra.mxu0 0.0
    %2053 = vmatpush.msra.mxu0 0.0
    %2054 = vmatpush.msra.mxu0 0.0
    %2055 = vmatpush.msra.mxu0 %v2037
    %2056 = vmatpush.msra.mxu0 %v2036
    %2057 = vmatpush.msra.mxu0 %v2035
    %2058 = vmatpush.msra.mxu0 %v2034
    %2059 = vmatpush.msra.mxu0 %v2033
    %2060 = vmatpush.msra.mxu0 %v2032
    %2061 = vmatpush.msra.mxu0 %v2031
    %2062 = vmatpush.msra.mxu0 %v2030
    %2063 = vmatmul.f32.gmra.mxu0 %v2045
    %v2064 = vpop.f32.mrf.mxu0
    %v2065 = vadd.f32 %v2040, %v2064
    %2066 = vdwg.mxu0
    %vm2067 = vcmask 15360
    %2068 = vst.msk [vmem:[%s10] sm:$0xff] %vm2067, %v2065
    // Predicated region
    $region54: #{tpu_custom_call.1} parent=1 // pred_check
      _
    $region55: #{tpu_custom_call.1} parent=1 // pred_check_branch
      %2070 = sbr.rel (0) target = $region57
    $region56: #{tpu_custom_call.1} parent=1 // pred_region
      _
    $region57: #{tpu_custom_call.1} parent=1 // pred_fallthru
      _
    // Predicated region
    $region58: #{tpu_custom_call.1} parent=1 // pred_check
      _
    $region59: #{tpu_custom_call.1} parent=1 // pred_check_branch
      %2072 = sbr.rel (0) target = $region61
    $region60: #{tpu_custom_call.1} parent=1 // pred_region
      _
    $region61: #{tpu_custom_call.1} parent=1 // pred_fallthru
      _
    %2073 = vsyncpa [#allocation4], 1
    %2074 = vsyncpa [#allocation6], 1

</llo_original>
